<compile_context>
chip_gen: v5e
topology: v5e:2x2
jax: 0.10.0
libtpu: 0.0.40
codegen_flags: <defaults>
</compile_context>

<pallas_src>
import functools

import jax
import jax.numpy as jnp
from jax.experimental import pallas as pl
from jax.experimental.pallas import tpu as pltpu  # noqa: F401  (kept for memory-space/compiler-params use when scaling up)


# ----------------------------------------------------------------------------
# Fused Pallas kernel: stacked LSTM + tanh + fc1 + tanh + fc2
# ----------------------------------------------------------------------------
def _fused_lstm_kernel(*refs, seq_len, batch, hidden_dim, n_layers):
    """refs = [x_flat, (w_ih_t, w_hh_t, bias) * n_layers,
               fc1_w_t, fc1_b, fc2_w_t, fc2_b, out]

    x_flat is time-major flattened: row t*B + b is timestep t of batch b.
    Gate order matches PyTorch nn.LSTM: [i, f, g, o] along the 4H axis.
    """
    T, B, H = seq_len, batch, hidden_dim
    x_ref = refs[0]
    layer_refs = refs[1:1 + 3 * n_layers]
    fc1w_ref, fc1b_ref, fc2w_ref, fc2b_ref, out_ref = refs[1 + 3 * n_layers:]

    x = x_ref[...].astype(jnp.float32)                     # (T*B, D_in)

    h = None
    for layer in range(n_layers):
        w_ih = layer_refs[3 * layer][...]                  # (D_in, 4H) pre-transposed
        w_hh = layer_refs[3 * layer + 1][...]              # (H, 4H)    pre-transposed
        bias = layer_refs[3 * layer + 2][...]              # (1, 4H)    b_ih + b_hh

        # Hoisted, time-independent input projection for all T steps at once.
        x_proj = jnp.dot(x, w_ih, preferred_element_type=jnp.float32) + bias  # (T*B, 4H)

        h = jnp.zeros((B, H), jnp.float32)
        c = jnp.zeros((B, H), jnp.float32)
        outs = []
        for t in range(T):                                 # serial recurrence (unrolled)
            gates = x_proj[t * B:(t + 1) * B, :] + jnp.dot(
                h, w_hh, preferred_element_type=jnp.float32)          # (B, 4H)
            # Whole-slab activations (full-vreg EUP), then static per-gate slices.
            sig = jax.nn.sigmoid(gates)
            tnh = jnp.tanh(gates)
            i_g = sig[:, 0 * H:1 * H]
            f_g = sig[:, 1 * H:2 * H]
            g_g = tnh[:, 2 * H:3 * H]
            o_g = sig[:, 3 * H:4 * H]
            c = f_g * c + i_g * g_g
            h = o_g * jnp.tanh(c)
            outs.append(h)
        if layer + 1 < n_layers:
            x = jnp.concatenate(outs, axis=0)              # (T*B, H) feeds next layer

    # Fused head: out[:, -1, :] is simply the final h of the last layer.
    h_last = jnp.tanh(h)
    z = jnp.tanh(jnp.dot(h_last, fc1w_ref[...],
                         preferred_element_type=jnp.float32) + fc1b_ref[...])
    y = jnp.dot(z, fc2w_ref[...], preferred_element_type=jnp.float32) + fc2b_ref[...]
    out_ref[...] = y.astype(out_ref.dtype)


# ----------------------------------------------------------------------------
# Wrapper
# ----------------------------------------------------------------------------
def lstm_forward(x_btd, params, hidden_dim):
    """Full forward pass matching the PyTorch module. x_btd: (B, T, D) batch_first."""
    assert x_btd.ndim == 3
    B, T, D = x_btd.shape
    H = hidden_dim
    n_layers = len(params["lstm"])
    O = params["fc2_w"].shape[0]

    # batch_first -> time-major, flattened so step t occupies rows [t*B, (t+1)*B).
    x_flat = jnp.transpose(x_btd, (1, 0, 2)).reshape(T * B, D).astype(jnp.float32)

    inputs = [x_flat]
    in_specs = [pl.BlockSpec(x_flat.shape, lambda: (0, 0))]

    for lp in params["lstm"]:
        w_ih_t = lp["w_ih"].T.astype(jnp.float32)                     # (D_in, 4H)
        w_hh_t = lp["w_hh"].T.astype(jnp.float32)                     # (H, 4H)
        bias = (lp["b_ih"] + lp["b_hh"]).reshape(1, 4 * H).astype(jnp.float32)
        for a in (w_ih_t, w_hh_t, bias):
            inputs.append(a)
            in_specs.append(pl.BlockSpec(a.shape, lambda: (0, 0)))

    fc1_w_t = params["fc1_w"].T.astype(jnp.float32)                   # (H, H)
    fc1_b = params["fc1_b"].reshape(1, H).astype(jnp.float32)
    fc2_w_t = params["fc2_w"].T.astype(jnp.float32)                   # (H, O)
    fc2_b = params["fc2_b"].reshape(1, O).astype(jnp.float32)
    for a in (fc1_w_t, fc1_b, fc2_w_t, fc2_b):
        inputs.append(a)
        in_specs.append(pl.BlockSpec(a.shape, lambda: (0, 0)))

    kernel = functools.partial(_fused_lstm_kernel, seq_len=T, batch=B,
                               hidden_dim=H, n_layers=n_layers)

    return pl.pallas_call(
        kernel,
        out_shape=jax.ShapeDtypeStruct((B, O), jnp.float32),
        in_specs=in_specs,
        out_specs=pl.BlockSpec((B, O), lambda: (0, 0)),
    )(*inputs)


# ----------------------------------------------------------------------------
# Deterministic parameter construction (synthetic, not a checkpoint)
# ----------------------------------------------------------------------------
def make_params(key, input_dim, hidden_dim, output_dim, n_layers):
    params = {"lstm": []}
    for layer in range(n_layers):
        d_in = input_dim if layer == 0 else hidden_dim
        key, k1, k2, k3, k4 = jax.random.split(key, 5)
        params["lstm"].append({
            "w_ih": 0.1 * jax.random.normal(k1, (4 * hidden_dim, d_in), jnp.float32),
            "w_hh": 0.1 * jax.random.normal(k2, (4 * hidden_dim, hidden_dim), jnp.float32),
            "b_ih": 0.1 * jax.random.normal(k3, (4 * hidden_dim,), jnp.float32),
            "b_hh": 0.1 * jax.random.normal(k4, (4 * hidden_dim,), jnp.float32),
        })
    key, k1, k2, k3, k4 = jax.random.split(key, 5)
    params["fc1_w"] = 0.1 * jax.random.normal(k1, (hidden_dim, hidden_dim), jnp.float32)
    params["fc1_b"] = 0.1 * jax.random.normal(k2, (hidden_dim,), jnp.float32)
    params["fc2_w"] = 0.1 * jax.random.normal(k3, (output_dim, hidden_dim), jnp.float32)
    params["fc2_b"] = 0.1 * jax.random.normal(k4, (output_dim,), jnp.float32)
    return params


# ----------------------------------------------------------------------------
# Pure-JAX reference (for correctness check)
# ----------------------------------------------------------------------------
def lstm_forward_ref(x_btd, params, hidden_dim):
    x = jnp.transpose(x_btd, (1, 0, 2)).astype(jnp.float32)   # (T, B, D)
    for lp in params["lstm"]:
        T, B, _ = x.shape
        H = hidden_dim
        h = jnp.zeros((B, H), jnp.float32)
        c = jnp.zeros((B, H), jnp.float32)
        outs = []
        for t in range(T):
            gates = x[t] @ lp["w_ih"].T + lp["b_ih"] + h @ lp["w_hh"].T + lp["b_hh"]
            i_g = jax.nn.sigmoid(gates[:, 0 * H:1 * H])
            f_g = jax.nn.sigmoid(gates[:, 1 * H:2 * H])
            g_g = jnp.tanh(gates[:, 2 * H:3 * H])
            o_g = jax.nn.sigmoid(gates[:, 3 * H:4 * H])
            c = f_g * c + i_g * g_g
            h = o_g * jnp.tanh(c)
            outs.append(h)
        x = jnp.stack(outs, axis=0)
    h_last = jnp.tanh(x[-1])
    z = jnp.tanh(h_last @ params["fc1_w"].T + params["fc1_b"])
    return z @ params["fc2_w"].T + params["fc2_b"]


if __name__ == "__main__":
    B, T = 2, 8
    INPUT_DIM, HIDDEN_DIM, OUTPUT_DIM, N_LAYERS = 16, 32, 8, 2

    key = jax.random.PRNGKey(0)
    kx, kp = jax.random.split(key)
    x = jax.random.normal(kx, (B, T, INPUT_DIM), jnp.float32)
    params = make_params(kp, INPUT_DIM, HIDDEN_DIM, OUTPUT_DIM, N_LAYERS)

    out = lstm_forward(x, params, HIDDEN_DIM)
    out = jax.block_until_ready(out)

    ref = lstm_forward_ref(x, params, HIDDEN_DIM)
    assert out.shape == (B, OUTPUT_DIM), out.shape
    assert jnp.allclose(out, ref, atol=1e-4, rtol=1e-4), (out, ref)

    print("KERNEL_OK")
</pallas_src>

<mosaic_0001>
module attributes {stable_mosaic.version = 11 : i64} {
  func.func @_fused_lstm_kernel(%arg0: memref<16x16xf32, #tpu.memory_space<vmem>>, %arg1: memref<16x128xf32, #tpu.memory_space<vmem>>, %arg2: memref<32x128xf32, #tpu.memory_space<vmem>>, %arg3: memref<1x128xf32, #tpu.memory_space<vmem>>, %arg4: memref<32x128xf32, #tpu.memory_space<vmem>>, %arg5: memref<32x128xf32, #tpu.memory_space<vmem>>, %arg6: memref<1x128xf32, #tpu.memory_space<vmem>>, %arg7: memref<32x32xf32, #tpu.memory_space<vmem>>, %arg8: memref<1x32xf32, #tpu.memory_space<vmem>>, %arg9: memref<32x8xf32, #tpu.memory_space<vmem>>, %arg10: memref<1x8xf32, #tpu.memory_space<vmem>>, %arg11: memref<2x8xf32, #tpu.memory_space<vmem>>) attributes {dimension_semantics = [], scalar_prefetch = 0 : i64, scratch_operands = 0 : i64, tpu.core_type = #tpu.core_type<tc>} {
    %c0 = arith.constant 0 : index
    %c0_0 = arith.constant 0 : index
    %0 = vector.load %arg0[%c0, %c0_0] : memref<16x16xf32, #tpu.memory_space<vmem>>, vector<16x16xf32>
    %c0_1 = arith.constant 0 : index
    %c0_2 = arith.constant 0 : index
    %1 = vector.load %arg1[%c0_1, %c0_2] : memref<16x128xf32, #tpu.memory_space<vmem>>, vector<16x128xf32>
    %c0_3 = arith.constant 0 : index
    %c0_4 = arith.constant 0 : index
    %2 = vector.load %arg2[%c0_3, %c0_4] : memref<32x128xf32, #tpu.memory_space<vmem>>, vector<32x128xf32>
    %c0_5 = arith.constant 0 : index
    %c0_6 = arith.constant 0 : index
    %3 = vector.load %arg3[%c0_5, %c0_6] : memref<1x128xf32, #tpu.memory_space<vmem>>, vector<1x128xf32>
    %cst = arith.constant dense<0.000000e+00> : vector<16x128xf32>
    %4 = tpu.matmul %0, %1, %cst {dimension_numbers = #tpu.dot_dimension_numbers<[1], [0], [0], [1], [0, 0, 1, 1], [], []>} : vector<16x16xf32>, vector<16x128xf32>, vector<16x128xf32> -> vector<16x128xf32>
    %5 = vector.broadcast %3 : vector<1x128xf32> to vector<16x128xf32>
    %6 = arith.addf %4, %5 : vector<16x128xf32>
    %cst_7 = arith.constant 0.000000e+00 : f32
    %7 = vector.broadcast %cst_7 : f32 to vector<2x32xf32>
    %cst_8 = arith.constant 0.000000e+00 : f32
    %8 = vector.broadcast %cst_8 : f32 to vector<2x32xf32>
    %9 = vector.extract_strided_slice %6 {offsets = [0, 0], sizes = [2, 128], strides = [1, 1]} : vector<16x128xf32> to vector<2x128xf32>
    %cst_9 = arith.constant dense<0.000000e+00> : vector<2x128xf32>
    %10 = tpu.matmul %7, %2, %cst_9 {dimension_numbers = #tpu.dot_dimension_numbers<[1], [0], [0], [1], [0, 0, 1, 1], [], []>} : vector<2x32xf32>, vector<32x128xf32>, vector<2x128xf32> -> vector<2x128xf32>
    %11 = arith.addf %9, %10 : vector<2x128xf32>
    %12 = arith.negf %11 : vector<2x128xf32>
    %13 = math.exp %12 : vector<2x128xf32>
    %cst_10 = arith.constant 1.000000e+00 : f32
    %14 = vector.broadcast %cst_10 : f32 to vector<2x128xf32>
    %15 = arith.addf %14, %13 : vector<2x128xf32>
    %16 = arith.divf %14, %15 : vector<2x128xf32>
    %17 = math.tanh %11 : vector<2x128xf32>
    %18 = vector.extract_strided_slice %16 {offsets = [0, 0], sizes = [2, 32], strides = [1, 1]} : vector<2x128xf32> to vector<2x32xf32>
    %19 = vector.extract_strided_slice %16 {offsets = [0, 32], sizes = [2, 32], strides = [1, 1]} : vector<2x128xf32> to vector<2x32xf32>
    %20 = vector.extract_strided_slice %17 {offsets = [0, 64], sizes = [2, 32], strides = [1, 1]} : vector<2x128xf32> to vector<2x32xf32>
    %21 = vector.extract_strided_slice %16 {offsets = [0, 96], sizes = [2, 32], strides = [1, 1]} : vector<2x128xf32> to vector<2x32xf32>
    %22 = arith.mulf %19, %8 : vector<2x32xf32>
    %23 = arith.mulf %18, %20 : vector<2x32xf32>
    %24 = arith.addf %22, %23 : vector<2x32xf32>
    %25 = math.tanh %24 : vector<2x32xf32>
    %26 = arith.mulf %21, %25 : vector<2x32xf32>
    %27 = vector.extract_strided_slice %6 {offsets = [2, 0], sizes = [2, 128], strides = [1, 1]} : vector<16x128xf32> to vector<2x128xf32>
    %cst_11 = arith.constant dense<0.000000e+00> : vector<2x128xf32>
    %28 = tpu.matmul %26, %2, %cst_11 {dimension_numbers = #tpu.dot_dimension_numbers<[1], [0], [0], [1], [0, 0, 1, 1], [], []>} : vector<2x32xf32>, vector<32x128xf32>, vector<2x128xf32> -> vector<2x128xf32>
    %29 = arith.addf %27, %28 : vector<2x128xf32>
    %30 = arith.negf %29 : vector<2x128xf32>
    %31 = math.exp %30 : vector<2x128xf32>
    %cst_12 = arith.constant 1.000000e+00 : f32
    %32 = vector.broadcast %cst_12 : f32 to vector<2x128xf32>
    %33 = arith.addf %32, %31 : vector<2x128xf32>
    %34 = arith.divf %32, %33 : vector<2x128xf32>
    %35 = math.tanh %29 : vector<2x128xf32>
    %36 = vector.extract_strided_slice %34 {offsets = [0, 0], sizes = [2, 32], strides = [1, 1]} : vector<2x128xf32> to vector<2x32xf32>
    %37 = vector.extract_strided_slice %34 {offsets = [0, 32], sizes = [2, 32], strides = [1, 1]} : vector<2x128xf32> to vector<2x32xf32>
    %38 = vector.extract_strided_slice %35 {offsets = [0, 64], sizes = [2, 32], strides = [1, 1]} : vector<2x128xf32> to vector<2x32xf32>
    %39 = vector.extract_strided_slice %34 {offsets = [0, 96], sizes = [2, 32], strides = [1, 1]} : vector<2x128xf32> to vector<2x32xf32>
    %40 = arith.mulf %37, %24 : vector<2x32xf32>
    %41 = arith.mulf %36, %38 : vector<2x32xf32>
    %42 = arith.addf %40, %41 : vector<2x32xf32>
    %43 = math.tanh %42 : vector<2x32xf32>
    %44 = arith.mulf %39, %43 : vector<2x32xf32>
    %45 = vector.extract_strided_slice %6 {offsets = [4, 0], sizes = [2, 128], strides = [1, 1]} : vector<16x128xf32> to vector<2x128xf32>
    %cst_13 = arith.constant dense<0.000000e+00> : vector<2x128xf32>
    %46 = tpu.matmul %44, %2, %cst_13 {dimension_numbers = #tpu.dot_dimension_numbers<[1], [0], [0], [1], [0, 0, 1, 1], [], []>} : vector<2x32xf32>, vector<32x128xf32>, vector<2x128xf32> -> vector<2x128xf32>
    %47 = arith.addf %45, %46 : vector<2x128xf32>
    %48 = arith.negf %47 : vector<2x128xf32>
    %49 = math.exp %48 : vector<2x128xf32>
    %cst_14 = arith.constant 1.000000e+00 : f32
    %50 = vector.broadcast %cst_14 : f32 to vector<2x128xf32>
    %51 = arith.addf %50, %49 : vector<2x128xf32>
    %52 = arith.divf %50, %51 : vector<2x128xf32>
    %53 = math.tanh %47 : vector<2x128xf32>
    %54 = vector.extract_strided_slice %52 {offsets = [0, 0], sizes = [2, 32], strides = [1, 1]} : vector<2x128xf32> to vector<2x32xf32>
    %55 = vector.extract_strided_slice %52 {offsets = [0, 32], sizes = [2, 32], strides = [1, 1]} : vector<2x128xf32> to vector<2x32xf32>
    %56 = vector.extract_strided_slice %53 {offsets = [0, 64], sizes = [2, 32], strides = [1, 1]} : vector<2x128xf32> to vector<2x32xf32>
    %57 = vector.extract_strided_slice %52 {offsets = [0, 96], sizes = [2, 32], strides = [1, 1]} : vector<2x128xf32> to vector<2x32xf32>
    %58 = arith.mulf %55, %42 : vector<2x32xf32>
    %59 = arith.mulf %54, %56 : vector<2x32xf32>
    %60 = arith.addf %58, %59 : vector<2x32xf32>
    %61 = math.tanh %60 : vector<2x32xf32>
    %62 = arith.mulf %57, %61 : vector<2x32xf32>
    %63 = vector.extract_strided_slice %6 {offsets = [6, 0], sizes = [2, 128], strides = [1, 1]} : vector<16x128xf32> to vector<2x128xf32>
    %cst_15 = arith.constant dense<0.000000e+00> : vector<2x128xf32>
    %64 = tpu.matmul %62, %2, %cst_15 {dimension_numbers = #tpu.dot_dimension_numbers<[1], [0], [0], [1], [0, 0, 1, 1], [], []>} : vector<2x32xf32>, vector<32x128xf32>, vector<2x128xf32> -> vector<2x128xf32>
    %65 = arith.addf %63, %64 : vector<2x128xf32>
    %66 = arith.negf %65 : vector<2x128xf32>
    %67 = math.exp %66 : vector<2x128xf32>
    %cst_16 = arith.constant 1.000000e+00 : f32
    %68 = vector.broadcast %cst_16 : f32 to vector<2x128xf32>
    %69 = arith.addf %68, %67 : vector<2x128xf32>
    %70 = arith.divf %68, %69 : vector<2x128xf32>
    %71 = math.tanh %65 : vector<2x128xf32>
    %72 = vector.extract_strided_slice %70 {offsets = [0, 0], sizes = [2, 32], strides = [1, 1]} : vector<2x128xf32> to vector<2x32xf32>
    %73 = vector.extract_strided_slice %70 {offsets = [0, 32], sizes = [2, 32], strides = [1, 1]} : vector<2x128xf32> to vector<2x32xf32>
    %74 = vector.extract_strided_slice %71 {offsets = [0, 64], sizes = [2, 32], strides = [1, 1]} : vector<2x128xf32> to vector<2x32xf32>
    %75 = vector.extract_strided_slice %70 {offsets = [0, 96], sizes = [2, 32], strides = [1, 1]} : vector<2x128xf32> to vector<2x32xf32>
    %76 = arith.mulf %73, %60 : vector<2x32xf32>
    %77 = arith.mulf %72, %74 : vector<2x32xf32>
    %78 = arith.addf %76, %77 : vector<2x32xf32>
    %79 = math.tanh %78 : vector<2x32xf32>
    %80 = arith.mulf %75, %79 : vector<2x32xf32>
    %81 = vector.extract_strided_slice %6 {offsets = [8, 0], sizes = [2, 128], strides = [1, 1]} : vector<16x128xf32> to vector<2x128xf32>
    %cst_17 = arith.constant dense<0.000000e+00> : vector<2x128xf32>
    %82 = tpu.matmul %80, %2, %cst_17 {dimension_numbers = #tpu.dot_dimension_numbers<[1], [0], [0], [1], [0, 0, 1, 1], [], []>} : vector<2x32xf32>, vector<32x128xf32>, vector<2x128xf32> -> vector<2x128xf32>
    %83 = arith.addf %81, %82 : vector<2x128xf32>
    %84 = arith.negf %83 : vector<2x128xf32>
    %85 = math.exp %84 : vector<2x128xf32>
    %cst_18 = arith.constant 1.000000e+00 : f32
    %86 = vector.broadcast %cst_18 : f32 to vector<2x128xf32>
    %87 = arith.addf %86, %85 : vector<2x128xf32>
    %88 = arith.divf %86, %87 : vector<2x128xf32>
    %89 = math.tanh %83 : vector<2x128xf32>
    %90 = vector.extract_strided_slice %88 {offsets = [0, 0], sizes = [2, 32], strides = [1, 1]} : vector<2x128xf32> to vector<2x32xf32>
    %91 = vector.extract_strided_slice %88 {offsets = [0, 32], sizes = [2, 32], strides = [1, 1]} : vector<2x128xf32> to vector<2x32xf32>
    %92 = vector.extract_strided_slice %89 {offsets = [0, 64], sizes = [2, 32], strides = [1, 1]} : vector<2x128xf32> to vector<2x32xf32>
    %93 = vector.extract_strided_slice %88 {offsets = [0, 96], sizes = [2, 32], strides = [1, 1]} : vector<2x128xf32> to vector<2x32xf32>
    %94 = arith.mulf %91, %78 : vector<2x32xf32>
    %95 = arith.mulf %90, %92 : vector<2x32xf32>
    %96 = arith.addf %94, %95 : vector<2x32xf32>
    %97 = math.tanh %96 : vector<2x32xf32>
    %98 = arith.mulf %93, %97 : vector<2x32xf32>
    %99 = vector.extract_strided_slice %6 {offsets = [10, 0], sizes = [2, 128], strides = [1, 1]} : vector<16x128xf32> to vector<2x128xf32>
    %cst_19 = arith.constant dense<0.000000e+00> : vector<2x128xf32>
    %100 = tpu.matmul %98, %2, %cst_19 {dimension_numbers = #tpu.dot_dimension_numbers<[1], [0], [0], [1], [0, 0, 1, 1], [], []>} : vector<2x32xf32>, vector<32x128xf32>, vector<2x128xf32> -> vector<2x128xf32>
    %101 = arith.addf %99, %100 : vector<2x128xf32>
    %102 = arith.negf %101 : vector<2x128xf32>
    %103 = math.exp %102 : vector<2x128xf32>
    %cst_20 = arith.constant 1.000000e+00 : f32
    %104 = vector.broadcast %cst_20 : f32 to vector<2x128xf32>
    %105 = arith.addf %104, %103 : vector<2x128xf32>
    %106 = arith.divf %104, %105 : vector<2x128xf32>
    %107 = math.tanh %101 : vector<2x128xf32>
    %108 = vector.extract_strided_slice %106 {offsets = [0, 0], sizes = [2, 32], strides = [1, 1]} : vector<2x128xf32> to vector<2x32xf32>
    %109 = vector.extract_strided_slice %106 {offsets = [0, 32], sizes = [2, 32], strides = [1, 1]} : vector<2x128xf32> to vector<2x32xf32>
    %110 = vector.extract_strided_slice %107 {offsets = [0, 64], sizes = [2, 32], strides = [1, 1]} : vector<2x128xf32> to vector<2x32xf32>
    %111 = vector.extract_strided_slice %106 {offsets = [0, 96], sizes = [2, 32], strides = [1, 1]} : vector<2x128xf32> to vector<2x32xf32>
    %112 = arith.mulf %109, %96 : vector<2x32xf32>
    %113 = arith.mulf %108, %110 : vector<2x32xf32>
    %114 = arith.addf %112, %113 : vector<2x32xf32>
    %115 = math.tanh %114 : vector<2x32xf32>
    %116 = arith.mulf %111, %115 : vector<2x32xf32>
    %117 = vector.extract_strided_slice %6 {offsets = [12, 0], sizes = [2, 128], strides = [1, 1]} : vector<16x128xf32> to vector<2x128xf32>
    %cst_21 = arith.constant dense<0.000000e+00> : vector<2x128xf32>
    %118 = tpu.matmul %116, %2, %cst_21 {dimension_numbers = #tpu.dot_dimension_numbers<[1], [0], [0], [1], [0, 0, 1, 1], [], []>} : vector<2x32xf32>, vector<32x128xf32>, vector<2x128xf32> -> vector<2x128xf32>
    %119 = arith.addf %117, %118 : vector<2x128xf32>
    %120 = arith.negf %119 : vector<2x128xf32>
    %121 = math.exp %120 : vector<2x128xf32>
    %cst_22 = arith.constant 1.000000e+00 : f32
    %122 = vector.broadcast %cst_22 : f32 to vector<2x128xf32>
    %123 = arith.addf %122, %121 : vector<2x128xf32>
    %124 = arith.divf %122, %123 : vector<2x128xf32>
    %125 = math.tanh %119 : vector<2x128xf32>
    %126 = vector.extract_strided_slice %124 {offsets = [0, 0], sizes = [2, 32], strides = [1, 1]} : vector<2x128xf32> to vector<2x32xf32>
    %127 = vector.extract_strided_slice %124 {offsets = [0, 32], sizes = [2, 32], strides = [1, 1]} : vector<2x128xf32> to vector<2x32xf32>
    %128 = vector.extract_strided_slice %125 {offsets = [0, 64], sizes = [2, 32], strides = [1, 1]} : vector<2x128xf32> to vector<2x32xf32>
    %129 = vector.extract_strided_slice %124 {offsets = [0, 96], sizes = [2, 32], strides = [1, 1]} : vector<2x128xf32> to vector<2x32xf32>
    %130 = arith.mulf %127, %114 : vector<2x32xf32>
    %131 = arith.mulf %126, %128 : vector<2x32xf32>
    %132 = arith.addf %130, %131 : vector<2x32xf32>
    %133 = math.tanh %132 : vector<2x32xf32>
    %134 = arith.mulf %129, %133 : vector<2x32xf32>
    %135 = vector.extract_strided_slice %6 {offsets = [14, 0], sizes = [2, 128], strides = [1, 1]} : vector<16x128xf32> to vector<2x128xf32>
    %cst_23 = arith.constant dense<0.000000e+00> : vector<2x128xf32>
    %136 = tpu.matmul %134, %2, %cst_23 {dimension_numbers = #tpu.dot_dimension_numbers<[1], [0], [0], [1], [0, 0, 1, 1], [], []>} : vector<2x32xf32>, vector<32x128xf32>, vector<2x128xf32> -> vector<2x128xf32>
    %137 = arith.addf %135, %136 : vector<2x128xf32>
    %138 = arith.negf %137 : vector<2x128xf32>
    %139 = math.exp %138 : vector<2x128xf32>
    %cst_24 = arith.constant 1.000000e+00 : f32
    %140 = vector.broadcast %cst_24 : f32 to vector<2x128xf32>
    %141 = arith.addf %140, %139 : vector<2x128xf32>
    %142 = arith.divf %140, %141 : vector<2x128xf32>
    %143 = math.tanh %137 : vector<2x128xf32>
    %144 = vector.extract_strided_slice %142 {offsets = [0, 0], sizes = [2, 32], strides = [1, 1]} : vector<2x128xf32> to vector<2x32xf32>
    %145 = vector.extract_strided_slice %142 {offsets = [0, 32], sizes = [2, 32], strides = [1, 1]} : vector<2x128xf32> to vector<2x32xf32>
    %146 = vector.extract_strided_slice %143 {offsets = [0, 64], sizes = [2, 32], strides = [1, 1]} : vector<2x128xf32> to vector<2x32xf32>
    %147 = vector.extract_strided_slice %142 {offsets = [0, 96], sizes = [2, 32], strides = [1, 1]} : vector<2x128xf32> to vector<2x32xf32>
    %148 = arith.mulf %145, %132 : vector<2x32xf32>
    %149 = arith.mulf %144, %146 : vector<2x32xf32>
    %150 = arith.addf %148, %149 : vector<2x32xf32>
    %151 = math.tanh %150 : vector<2x32xf32>
    %152 = arith.mulf %147, %151 : vector<2x32xf32>
    %153 = tpu.concatenate %26, %44, %62, %80, %98, %116, %134, %152 in 0 : vector<2x32xf32>, vector<2x32xf32>, vector<2x32xf32>, vector<2x32xf32>, vector<2x32xf32>, vector<2x32xf32>, vector<2x32xf32>, vector<2x32xf32> -> vector<16x32xf32>
    %c0_25 = arith.constant 0 : index
    %c0_26 = arith.constant 0 : index
    %154 = vector.load %arg4[%c0_25, %c0_26] : memref<32x128xf32, #tpu.memory_space<vmem>>, vector<32x128xf32>
    %c0_27 = arith.constant 0 : index
    %c0_28 = arith.constant 0 : index
    %155 = vector.load %arg5[%c0_27, %c0_28] : memref<32x128xf32, #tpu.memory_space<vmem>>, vector<32x128xf32>
    %c0_29 = arith.constant 0 : index
    %c0_30 = arith.constant 0 : index
    %156 = vector.load %arg6[%c0_29, %c0_30] : memref<1x128xf32, #tpu.memory_space<vmem>>, vector<1x128xf32>
    %cst_31 = arith.constant dense<0.000000e+00> : vector<16x128xf32>
    %157 = tpu.matmul %153, %154, %cst_31 {dimension_numbers = #tpu.dot_dimension_numbers<[1], [0], [0], [1], [0, 0, 1, 1], [], []>} : vector<16x32xf32>, vector<32x128xf32>, vector<16x128xf32> -> vector<16x128xf32>
    %158 = vector.broadcast %156 : vector<1x128xf32> to vector<16x128xf32>
    %159 = arith.addf %157, %158 : vector<16x128xf32>
    %cst_32 = arith.constant 0.000000e+00 : f32
    %160 = vector.broadcast %cst_32 : f32 to vector<2x32xf32>
    %cst_33 = arith.constant 0.000000e+00 : f32
    %161 = vector.broadcast %cst_33 : f32 to vector<2x32xf32>
    %162 = vector.extract_strided_slice %159 {offsets = [0, 0], sizes = [2, 128], strides = [1, 1]} : vector<16x128xf32> to vector<2x128xf32>
    %cst_34 = arith.constant dense<0.000000e+00> : vector<2x128xf32>
    %163 = tpu.matmul %160, %155, %cst_34 {dimension_numbers = #tpu.dot_dimension_numbers<[1], [0], [0], [1], [0, 0, 1, 1], [], []>} : vector<2x32xf32>, vector<32x128xf32>, vector<2x128xf32> -> vector<2x128xf32>
    %164 = arith.addf %162, %163 : vector<2x128xf32>
    %165 = arith.negf %164 : vector<2x128xf32>
    %166 = math.exp %165 : vector<2x128xf32>
    %cst_35 = arith.constant 1.000000e+00 : f32
    %167 = vector.broadcast %cst_35 : f32 to vector<2x128xf32>
    %168 = arith.addf %167, %166 : vector<2x128xf32>
    %169 = arith.divf %167, %168 : vector<2x128xf32>
    %170 = math.tanh %164 : vector<2x128xf32>
    %171 = vector.extract_strided_slice %169 {offsets = [0, 0], sizes = [2, 32], strides = [1, 1]} : vector<2x128xf32> to vector<2x32xf32>
    %172 = vector.extract_strided_slice %169 {offsets = [0, 32], sizes = [2, 32], strides = [1, 1]} : vector<2x128xf32> to vector<2x32xf32>
    %173 = vector.extract_strided_slice %170 {offsets = [0, 64], sizes = [2, 32], strides = [1, 1]} : vector<2x128xf32> to vector<2x32xf32>
    %174 = vector.extract_strided_slice %169 {offsets = [0, 96], sizes = [2, 32], strides = [1, 1]} : vector<2x128xf32> to vector<2x32xf32>
    %175 = arith.mulf %172, %161 : vector<2x32xf32>
    %176 = arith.mulf %171, %173 : vector<2x32xf32>
    %177 = arith.addf %175, %176 : vector<2x32xf32>
    %178 = math.tanh %177 : vector<2x32xf32>
    %179 = arith.mulf %174, %178 : vector<2x32xf32>
    %180 = vector.extract_strided_slice %159 {offsets = [2, 0], sizes = [2, 128], strides = [1, 1]} : vector<16x128xf32> to vector<2x128xf32>
    %cst_36 = arith.constant dense<0.000000e+00> : vector<2x128xf32>
    %181 = tpu.matmul %179, %155, %cst_36 {dimension_numbers = #tpu.dot_dimension_numbers<[1], [0], [0], [1], [0, 0, 1, 1], [], []>} : vector<2x32xf32>, vector<32x128xf32>, vector<2x128xf32> -> vector<2x128xf32>
    %182 = arith.addf %180, %181 : vector<2x128xf32>
    %183 = arith.negf %182 : vector<2x128xf32>
    %184 = math.exp %183 : vector<2x128xf32>
    %cst_37 = arith.constant 1.000000e+00 : f32
    %185 = vector.broadcast %cst_37 : f32 to vector<2x128xf32>
    %186 = arith.addf %185, %184 : vector<2x128xf32>
    %187 = arith.divf %185, %186 : vector<2x128xf32>
    %188 = math.tanh %182 : vector<2x128xf32>
    %189 = vector.extract_strided_slice %187 {offsets = [0, 0], sizes = [2, 32], strides = [1, 1]} : vector<2x128xf32> to vector<2x32xf32>
    %190 = vector.extract_strided_slice %187 {offsets = [0, 32], sizes = [2, 32], strides = [1, 1]} : vector<2x128xf32> to vector<2x32xf32>
    %191 = vector.extract_strided_slice %188 {offsets = [0, 64], sizes = [2, 32], strides = [1, 1]} : vector<2x128xf32> to vector<2x32xf32>
    %192 = vector.extract_strided_slice %187 {offsets = [0, 96], sizes = [2, 32], strides = [1, 1]} : vector<2x128xf32> to vector<2x32xf32>
    %193 = arith.mulf %190, %177 : vector<2x32xf32>
    %194 = arith.mulf %189, %191 : vector<2x32xf32>
    %195 = arith.addf %193, %194 : vector<2x32xf32>
    %196 = math.tanh %195 : vector<2x32xf32>
    %197 = arith.mulf %192, %196 : vector<2x32xf32>
    %198 = vector.extract_strided_slice %159 {offsets = [4, 0], sizes = [2, 128], strides = [1, 1]} : vector<16x128xf32> to vector<2x128xf32>
    %cst_38 = arith.constant dense<0.000000e+00> : vector<2x128xf32>
    %199 = tpu.matmul %197, %155, %cst_38 {dimension_numbers = #tpu.dot_dimension_numbers<[1], [0], [0], [1], [0, 0, 1, 1], [], []>} : vector<2x32xf32>, vector<32x128xf32>, vector<2x128xf32> -> vector<2x128xf32>
    %200 = arith.addf %198, %199 : vector<2x128xf32>
    %201 = arith.negf %200 : vector<2x128xf32>
    %202 = math.exp %201 : vector<2x128xf32>
    %cst_39 = arith.constant 1.000000e+00 : f32
    %203 = vector.broadcast %cst_39 : f32 to vector<2x128xf32>
    %204 = arith.addf %203, %202 : vector<2x128xf32>
    %205 = arith.divf %203, %204 : vector<2x128xf32>
    %206 = math.tanh %200 : vector<2x128xf32>
    %207 = vector.extract_strided_slice %205 {offsets = [0, 0], sizes = [2, 32], strides = [1, 1]} : vector<2x128xf32> to vector<2x32xf32>
    %208 = vector.extract_strided_slice %205 {offsets = [0, 32], sizes = [2, 32], strides = [1, 1]} : vector<2x128xf32> to vector<2x32xf32>
    %209 = vector.extract_strided_slice %206 {offsets = [0, 64], sizes = [2, 32], strides = [1, 1]} : vector<2x128xf32> to vector<2x32xf32>
    %210 = vector.extract_strided_slice %205 {offsets = [0, 96], sizes = [2, 32], strides = [1, 1]} : vector<2x128xf32> to vector<2x32xf32>
    %211 = arith.mulf %208, %195 : vector<2x32xf32>
    %212 = arith.mulf %207, %209 : vector<2x32xf32>
    %213 = arith.addf %211, %212 : vector<2x32xf32>
    %214 = math.tanh %213 : vector<2x32xf32>
    %215 = arith.mulf %210, %214 : vector<2x32xf32>
    %216 = vector.extract_strided_slice %159 {offsets = [6, 0], sizes = [2, 128], strides = [1, 1]} : vector<16x128xf32> to vector<2x128xf32>
    %cst_40 = arith.constant dense<0.000000e+00> : vector<2x128xf32>
    %217 = tpu.matmul %215, %155, %cst_40 {dimension_numbers = #tpu.dot_dimension_numbers<[1], [0], [0], [1], [0, 0, 1, 1], [], []>} : vector<2x32xf32>, vector<32x128xf32>, vector<2x128xf32> -> vector<2x128xf32>
    %218 = arith.addf %216, %217 : vector<2x128xf32>
    %219 = arith.negf %218 : vector<2x128xf32>
    %220 = math.exp %219 : vector<2x128xf32>
    %cst_41 = arith.constant 1.000000e+00 : f32
    %221 = vector.broadcast %cst_41 : f32 to vector<2x128xf32>
    %222 = arith.addf %221, %220 : vector<2x128xf32>
    %223 = arith.divf %221, %222 : vector<2x128xf32>
    %224 = math.tanh %218 : vector<2x128xf32>
    %225 = vector.extract_strided_slice %223 {offsets = [0, 0], sizes = [2, 32], strides = [1, 1]} : vector<2x128xf32> to vector<2x32xf32>
    %226 = vector.extract_strided_slice %223 {offsets = [0, 32], sizes = [2, 32], strides = [1, 1]} : vector<2x128xf32> to vector<2x32xf32>
    %227 = vector.extract_strided_slice %224 {offsets = [0, 64], sizes = [2, 32], strides = [1, 1]} : vector<2x128xf32> to vector<2x32xf32>
    %228 = vector.extract_strided_slice %223 {offsets = [0, 96], sizes = [2, 32], strides = [1, 1]} : vector<2x128xf32> to vector<2x32xf32>
    %229 = arith.mulf %226, %213 : vector<2x32xf32>
    %230 = arith.mulf %225, %227 : vector<2x32xf32>
    %231 = arith.addf %229, %230 : vector<2x32xf32>
    %232 = math.tanh %231 : vector<2x32xf32>
    %233 = arith.mulf %228, %232 : vector<2x32xf32>
    %234 = vector.extract_strided_slice %159 {offsets = [8, 0], sizes = [2, 128], strides = [1, 1]} : vector<16x128xf32> to vector<2x128xf32>
    %cst_42 = arith.constant dense<0.000000e+00> : vector<2x128xf32>
    %235 = tpu.matmul %233, %155, %cst_42 {dimension_numbers = #tpu.dot_dimension_numbers<[1], [0], [0], [1], [0, 0, 1, 1], [], []>} : vector<2x32xf32>, vector<32x128xf32>, vector<2x128xf32> -> vector<2x128xf32>
    %236 = arith.addf %234, %235 : vector<2x128xf32>
    %237 = arith.negf %236 : vector<2x128xf32>
    %238 = math.exp %237 : vector<2x128xf32>
    %cst_43 = arith.constant 1.000000e+00 : f32
    %239 = vector.broadcast %cst_43 : f32 to vector<2x128xf32>
    %240 = arith.addf %239, %238 : vector<2x128xf32>
    %241 = arith.divf %239, %240 : vector<2x128xf32>
    %242 = math.tanh %236 : vector<2x128xf32>
    %243 = vector.extract_strided_slice %241 {offsets = [0, 0], sizes = [2, 32], strides = [1, 1]} : vector<2x128xf32> to vector<2x32xf32>
    %244 = vector.extract_strided_slice %241 {offsets = [0, 32], sizes = [2, 32], strides = [1, 1]} : vector<2x128xf32> to vector<2x32xf32>
    %245 = vector.extract_strided_slice %242 {offsets = [0, 64], sizes = [2, 32], strides = [1, 1]} : vector<2x128xf32> to vector<2x32xf32>
    %246 = vector.extract_strided_slice %241 {offsets = [0, 96], sizes = [2, 32], strides = [1, 1]} : vector<2x128xf32> to vector<2x32xf32>
    %247 = arith.mulf %244, %231 : vector<2x32xf32>
    %248 = arith.mulf %243, %245 : vector<2x32xf32>
    %249 = arith.addf %247, %248 : vector<2x32xf32>
    %250 = math.tanh %249 : vector<2x32xf32>
    %251 = arith.mulf %246, %250 : vector<2x32xf32>
    %252 = vector.extract_strided_slice %159 {offsets = [10, 0], sizes = [2, 128], strides = [1, 1]} : vector<16x128xf32> to vector<2x128xf32>
    %cst_44 = arith.constant dense<0.000000e+00> : vector<2x128xf32>
    %253 = tpu.matmul %251, %155, %cst_44 {dimension_numbers = #tpu.dot_dimension_numbers<[1], [0], [0], [1], [0, 0, 1, 1], [], []>} : vector<2x32xf32>, vector<32x128xf32>, vector<2x128xf32> -> vector<2x128xf32>
    %254 = arith.addf %252, %253 : vector<2x128xf32>
    %255 = arith.negf %254 : vector<2x128xf32>
    %256 = math.exp %255 : vector<2x128xf32>
    %cst_45 = arith.constant 1.000000e+00 : f32
    %257 = vector.broadcast %cst_45 : f32 to vector<2x128xf32>
    %258 = arith.addf %257, %256 : vector<2x128xf32>
    %259 = arith.divf %257, %258 : vector<2x128xf32>
    %260 = math.tanh %254 : vector<2x128xf32>
    %261 = vector.extract_strided_slice %259 {offsets = [0, 0], sizes = [2, 32], strides = [1, 1]} : vector<2x128xf32> to vector<2x32xf32>
    %262 = vector.extract_strided_slice %259 {offsets = [0, 32], sizes = [2, 32], strides = [1, 1]} : vector<2x128xf32> to vector<2x32xf32>
    %263 = vector.extract_strided_slice %260 {offsets = [0, 64], sizes = [2, 32], strides = [1, 1]} : vector<2x128xf32> to vector<2x32xf32>
    %264 = vector.extract_strided_slice %259 {offsets = [0, 96], sizes = [2, 32], strides = [1, 1]} : vector<2x128xf32> to vector<2x32xf32>
    %265 = arith.mulf %262, %249 : vector<2x32xf32>
    %266 = arith.mulf %261, %263 : vector<2x32xf32>
    %267 = arith.addf %265, %266 : vector<2x32xf32>
    %268 = math.tanh %267 : vector<2x32xf32>
    %269 = arith.mulf %264, %268 : vector<2x32xf32>
    %270 = vector.extract_strided_slice %159 {offsets = [12, 0], sizes = [2, 128], strides = [1, 1]} : vector<16x128xf32> to vector<2x128xf32>
    %cst_46 = arith.constant dense<0.000000e+00> : vector<2x128xf32>
    %271 = tpu.matmul %269, %155, %cst_46 {dimension_numbers = #tpu.dot_dimension_numbers<[1], [0], [0], [1], [0, 0, 1, 1], [], []>} : vector<2x32xf32>, vector<32x128xf32>, vector<2x128xf32> -> vector<2x128xf32>
    %272 = arith.addf %270, %271 : vector<2x128xf32>
    %273 = arith.negf %272 : vector<2x128xf32>
    %274 = math.exp %273 : vector<2x128xf32>
    %cst_47 = arith.constant 1.000000e+00 : f32
    %275 = vector.broadcast %cst_47 : f32 to vector<2x128xf32>
    %276 = arith.addf %275, %274 : vector<2x128xf32>
    %277 = arith.divf %275, %276 : vector<2x128xf32>
    %278 = math.tanh %272 : vector<2x128xf32>
    %279 = vector.extract_strided_slice %277 {offsets = [0, 0], sizes = [2, 32], strides = [1, 1]} : vector<2x128xf32> to vector<2x32xf32>
    %280 = vector.extract_strided_slice %277 {offsets = [0, 32], sizes = [2, 32], strides = [1, 1]} : vector<2x128xf32> to vector<2x32xf32>
    %281 = vector.extract_strided_slice %278 {offsets = [0, 64], sizes = [2, 32], strides = [1, 1]} : vector<2x128xf32> to vector<2x32xf32>
    %282 = vector.extract_strided_slice %277 {offsets = [0, 96], sizes = [2, 32], strides = [1, 1]} : vector<2x128xf32> to vector<2x32xf32>
    %283 = arith.mulf %280, %267 : vector<2x32xf32>
    %284 = arith.mulf %279, %281 : vector<2x32xf32>
    %285 = arith.addf %283, %284 : vector<2x32xf32>
    %286 = math.tanh %285 : vector<2x32xf32>
    %287 = arith.mulf %282, %286 : vector<2x32xf32>
    %288 = vector.extract_strided_slice %159 {offsets = [14, 0], sizes = [2, 128], strides = [1, 1]} : vector<16x128xf32> to vector<2x128xf32>
    %cst_48 = arith.constant dense<0.000000e+00> : vector<2x128xf32>
    %289 = tpu.matmul %287, %155, %cst_48 {dimension_numbers = #tpu.dot_dimension_numbers<[1], [0], [0], [1], [0, 0, 1, 1], [], []>} : vector<2x32xf32>, vector<32x128xf32>, vector<2x128xf32> -> vector<2x128xf32>
    %290 = arith.addf %288, %289 : vector<2x128xf32>
    %291 = arith.negf %290 : vector<2x128xf32>
    %292 = math.exp %291 : vector<2x128xf32>
    %cst_49 = arith.constant 1.000000e+00 : f32
    %293 = vector.broadcast %cst_49 : f32 to vector<2x128xf32>
    %294 = arith.addf %293, %292 : vector<2x128xf32>
    %295 = arith.divf %293, %294 : vector<2x128xf32>
    %296 = math.tanh %290 : vector<2x128xf32>
    %297 = vector.extract_strided_slice %295 {offsets = [0, 0], sizes = [2, 32], strides = [1, 1]} : vector<2x128xf32> to vector<2x32xf32>
    %298 = vector.extract_strided_slice %295 {offsets = [0, 32], sizes = [2, 32], strides = [1, 1]} : vector<2x128xf32> to vector<2x32xf32>
    %299 = vector.extract_strided_slice %296 {offsets = [0, 64], sizes = [2, 32], strides = [1, 1]} : vector<2x128xf32> to vector<2x32xf32>
    %300 = vector.extract_strided_slice %295 {offsets = [0, 96], sizes = [2, 32], strides = [1, 1]} : vector<2x128xf32> to vector<2x32xf32>
    %301 = arith.mulf %298, %285 : vector<2x32xf32>
    %302 = arith.mulf %297, %299 : vector<2x32xf32>
    %303 = arith.addf %301, %302 : vector<2x32xf32>
    %304 = math.tanh %303 : vector<2x32xf32>
    %305 = arith.mulf %300, %304 : vector<2x32xf32>
    %306 = math.tanh %305 : vector<2x32xf32>
    %c0_50 = arith.constant 0 : index
    %c0_51 = arith.constant 0 : index
    %307 = vector.load %arg7[%c0_50, %c0_51] : memref<32x32xf32, #tpu.memory_space<vmem>>, vector<32x32xf32>
    %cst_52 = arith.constant dense<0.000000e+00> : vector<2x32xf32>
    %308 = tpu.matmul %306, %307, %cst_52 {dimension_numbers = #tpu.dot_dimension_numbers<[1], [0], [0], [1], [0, 0, 1, 1], [], []>} : vector<2x32xf32>, vector<32x32xf32>, vector<2x32xf32> -> vector<2x32xf32>
    %c0_53 = arith.constant 0 : index
    %c0_54 = arith.constant 0 : index
    %309 = vector.load %arg8[%c0_53, %c0_54] : memref<1x32xf32, #tpu.memory_space<vmem>>, vector<1x32xf32>
    %310 = vector.broadcast %309 : vector<1x32xf32> to vector<2x32xf32>
    %311 = arith.addf %308, %310 : vector<2x32xf32>
    %312 = math.tanh %311 : vector<2x32xf32>
    %c0_55 = arith.constant 0 : index
    %c0_56 = arith.constant 0 : index
    %313 = vector.load %arg9[%c0_55, %c0_56] : memref<32x8xf32, #tpu.memory_space<vmem>>, vector<32x8xf32>
    %cst_57 = arith.constant dense<0.000000e+00> : vector<2x8xf32>
    %314 = tpu.matmul %312, %313, %cst_57 {dimension_numbers = #tpu.dot_dimension_numbers<[1], [0], [0], [1], [0, 0, 1, 1], [], []>} : vector<2x32xf32>, vector<32x8xf32>, vector<2x8xf32> -> vector<2x8xf32>
    %c0_58 = arith.constant 0 : index
    %c0_59 = arith.constant 0 : index
    %315 = vector.load %arg10[%c0_58, %c0_59] : memref<1x8xf32, #tpu.memory_space<vmem>>, vector<1x8xf32>
    %316 = vector.broadcast %315 : vector<1x8xf32> to vector<2x8xf32>
    %317 = arith.addf %314, %316 : vector<2x8xf32>
    %c0_60 = arith.constant 0 : index
    %c0_61 = arith.constant 0 : index
    %318 = vector.load %arg11[%c0_60, %c0_61] : memref<2x8xf32, #tpu.memory_space<vmem>>, vector<2x8xf32>
    tpu.vector_store %arg11[%c0_60, %c0_61], %317 {strides = array<i32>} : memref<2x8xf32, #tpu.memory_space<vmem>>, vector<2x8xf32>,
    return
  }
}

</mosaic_0001>

<llo_original>
// kernel: tpu_custom_call.1
$region0: #{tpu_custom_call.1}
  #allocation0 [shape = 'u32[]', space=smem, size = 0x4, offset = 0x4, fixed_abs, tag = 'smem constant byte address 0x4 - core index']
  #allocation1 [shape = 'u32[72,128]{1,0:T(1,128)}', space=vmem, size = 0x9000, scoped, tag = 'internal scratch']
  %s0 = inlined_call_operand.hbm [shape: f32[16,16], index: 0, kind: input, shape index: {}]
  %s1 = inlined_call_operand.hbm [shape: f32[16,128], index: 1, kind: input, shape index: {}]
  %s2 = inlined_call_operand.vmem [shape: f32[32,128], index: 2, kind: input, shape index: {}]
  %s3 = inlined_call_operand.vmem [shape: f32[1,128], index: 3, kind: input, shape index: {}]
  %s4 = inlined_call_operand.hbm [shape: f32[32,128], index: 4, kind: input, shape index: {}]
  %s5 = inlined_call_operand.hbm [shape: f32[32,128], index: 5, kind: input, shape index: {}]
  %s6 = inlined_call_operand.vmem [shape: f32[1,128], index: 6, kind: input, shape index: {}]
  %s7 = inlined_call_operand.hbm [shape: f32[32,32], index: 7, kind: input, shape index: {}]
  %s8 = inlined_call_operand.vmem [shape: f32[1,32], index: 8, kind: input, shape index: {}]
  %s9 = inlined_call_operand.vmem [shape: f32[32,8], index: 9, kind: input, shape index: {}]
  %s10 = inlined_call_operand.vmem [shape: f32[1,8], index: 10, kind: input, shape index: {}]
  %s11 = inlined_call_operand.hbm [shape: f32[2,8], index: 11, kind: output, shape index: {}]
  %s12 = sld [smem:[#allocation0]]
  $region74: #{tpu_custom_call.1} parent=0
    _
  %s14 = ssub.s32 1, %s12
  %s15 = scalar_select 0, %s14, %s12
  $region1: #{tpu_custom_call.1} parent=0
    #allocation2 [shape = 'u8[8192]{0}', space=vmem, size = 0x2000, scoped, tag = 'input window, operand 0, single buffered']
    #allocation3 [shape = 's32[1]{0}', space=sflag, size = 0x4, scoped, tag = 'scoped memory for tpu_custom_call.1']
    #allocation4 [shape = 's32[1]{0}', space=sflag, size = 0x4, scoped, tag = 'scoped memory for tpu_custom_call.1']
    #allocation5 [shape = 'u8[8192]{0}', space=vmem, size = 0x2000, scoped, tag = 'input window, operand 1, single buffered']
    #allocation6 [shape = 's32[1]{0}', space=sflag, size = 0x4, scoped, tag = 'scoped memory for tpu_custom_call.1']
    #allocation7 [shape = 'u8[16384]{0}', space=vmem, size = 0x4000, scoped, tag = 'input window, operand 4, single buffered']
    #allocation8 [shape = 'u8[16384]{0}', space=vmem, size = 0x4000, scoped, tag = 'input window, operand 5, single buffered']
    #allocation9 [shape = 's32[1]{0}', space=sflag, size = 0x4, scoped, tag = 'scoped memory for tpu_custom_call.1']
    #allocation10 [shape = 'u8[16384]{0}', space=vmem, size = 0x4000, scoped, tag = 'input window, operand 7, single buffered']
    #allocation11 [shape = 'u8[1024]{0}', space=vmem, size = 0x400, scoped, tag = 'output window, operand 0, single buffered']
    %16 = vsyncpa [#allocation3], 0
    %17 = vsyncpa [#allocation6], 0
    %18 = vsyncpa [#allocation9], 0
    %19 = vsyncpa [#allocation4], 0
    // Predicated region
    $region2: #{tpu_custom_call.1} parent=1 // pred_check
      _
    $region3: #{tpu_custom_call.1} parent=1 // pred_check_branch
      %21 = sbr.rel (0) target = $region5
    $region4: #{tpu_custom_call.1} parent=1 // pred_region
      %23 = vsyncadd [#allocation3], 0
      %s24 = sshll.u32 %s0, 4
      %s25 = int_to_ptr.hbm [resolvable:$true] %s24
      %s26 = sshll.u32 [#allocation2], 4
      %s27 = int_to_ptr.vmem [resolvable:$true] %s26
      %32 = dma.hbm_to_vmem [thread:$0]  %s25, 256, %s27, [#allocation3], 128, 128, 8
    $region5: #{tpu_custom_call.1} parent=1 // pred_fallthru
      _
    // Predicated region
    $region6: #{tpu_custom_call.1} parent=1 // pred_check
      _
    $region7: #{tpu_custom_call.1} parent=1 // pred_check_branch
      %34 = sbr.rel (0) target = $region9
    $region8: #{tpu_custom_call.1} parent=1 // pred_region
      %36 = vsyncadd [#allocation6], 0
      %s37 = sshll.u32 %s1, 4
      %s38 = int_to_ptr.hbm [resolvable:$true] %s37
      %s39 = sshll.u32 [#allocation5], 4
      %s40 = int_to_ptr.vmem [resolvable:$true] %s39
      %45 = dma.hbm_to_vmem [thread:$0]  %s38, 256, %s40, [#allocation6], 128, 128, 8
    $region9: #{tpu_custom_call.1} parent=1 // pred_fallthru
      _
    // Predicated region
    $region10: #{tpu_custom_call.1} parent=1 // pred_check
      _
    $region11: #{tpu_custom_call.1} parent=1 // pred_check_branch
      %47 = sbr.rel (0) target = $region13
    $region12: #{tpu_custom_call.1} parent=1 // pred_region
      _
    $region13: #{tpu_custom_call.1} parent=1 // pred_fallthru
      _
    // Predicated region
    $region14: #{tpu_custom_call.1} parent=1 // pred_check
      _
    $region15: #{tpu_custom_call.1} parent=1 // pred_check_branch
      %49 = sbr.rel (0) target = $region17
    $region16: #{tpu_custom_call.1} parent=1 // pred_region
      _
    $region17: #{tpu_custom_call.1} parent=1 // pred_fallthru
      _
    // Predicated region
    $region18: #{tpu_custom_call.1} parent=1 // pred_check
      _
    $region19: #{tpu_custom_call.1} parent=1 // pred_check_branch
      %51 = sbr.rel (0) target = $region21
    $region20: #{tpu_custom_call.1} parent=1 // pred_region
      %53 = vsyncadd [#allocation6], 0
      %s54 = sshll.u32 %s4, 4
      %s55 = int_to_ptr.hbm [resolvable:$true] %s54
      %s56 = sshll.u32 [#allocation7], 4
      %s57 = int_to_ptr.vmem [resolvable:$true] %s56
      %62 = dma.hbm_to_vmem [thread:$0]  %s55, 512, %s57, [#allocation6], 128, 128, 8
    $region21: #{tpu_custom_call.1} parent=1 // pred_fallthru
      _
    // Predicated region
    $region22: #{tpu_custom_call.1} parent=1 // pred_check
      _
    $region23: #{tpu_custom_call.1} parent=1 // pred_check_branch
      %64 = sbr.rel (0) target = $region25
    $region24: #{tpu_custom_call.1} parent=1 // pred_region
      %66 = vsyncadd [#allocation9], 0
      %s67 = sshll.u32 %s5, 4
      %s68 = int_to_ptr.hbm [resolvable:$true] %s67
      %s69 = sshll.u32 [#allocation8], 4
      %s70 = int_to_ptr.vmem [resolvable:$true] %s69
      %75 = dma.hbm_to_vmem [thread:$0]  %s68, 512, %s70, [#allocation9], 128, 128, 8
    $region25: #{tpu_custom_call.1} parent=1 // pred_fallthru
      _
    // Predicated region
    $region26: #{tpu_custom_call.1} parent=1 // pred_check
      _
    $region27: #{tpu_custom_call.1} parent=1 // pred_check_branch
      %77 = sbr.rel (0) target = $region29
    $region28: #{tpu_custom_call.1} parent=1 // pred_region
      _
    $region29: #{tpu_custom_call.1} parent=1 // pred_fallthru
      _
    // Predicated region
    $region30: #{tpu_custom_call.1} parent=1 // pred_check
      _
    $region31: #{tpu_custom_call.1} parent=1 // pred_check_branch
      %79 = sbr.rel (0) target = $region33
    $region32: #{tpu_custom_call.1} parent=1 // pred_region
      %81 = vsyncadd [#allocation9], 0
      %s82 = sshll.u32 %s7, 4
      %s83 = int_to_ptr.hbm [resolvable:$true] %s82
      %s84 = sshll.u32 [#allocation10], 4
      %s85 = int_to_ptr.vmem [resolvable:$true] %s84
      %90 = dma.hbm_to_vmem [thread:$0]  %s83, 512, %s85, [#allocation9], 128, 128, 8
    $region33: #{tpu_custom_call.1} parent=1 // pred_fallthru
      _
    // Predicated region
    $region34: #{tpu_custom_call.1} parent=1 // pred_check
      _
    $region35: #{tpu_custom_call.1} parent=1 // pred_check_branch
      %92 = sbr.rel (0) target = $region37
    $region36: #{tpu_custom_call.1} parent=1 // pred_region
      _
    $region37: #{tpu_custom_call.1} parent=1 // pred_fallthru
      _
    // Predicated region
    $region38: #{tpu_custom_call.1} parent=1 // pred_check
      _
    $region39: #{tpu_custom_call.1} parent=1 // pred_check_branch
      %94 = sbr.rel (0) target = $region41
    $region40: #{tpu_custom_call.1} parent=1 // pred_region
      _
    $region41: #{tpu_custom_call.1} parent=1 // pred_fallthru
      _
    // Predicated region
    $region42: #{tpu_custom_call.1} parent=1 // pred_check
      _
    $region43: #{tpu_custom_call.1} parent=1 // pred_check_branch
      %96 = sbr.rel (0) target = $region45
    $region44: #{tpu_custom_call.1} parent=1 // pred_region
      _
    $region45: #{tpu_custom_call.1} parent=1 // pred_fallthru
      _
    // Predicated region
    $region46: #{tpu_custom_call.1} parent=1 // pred_check
      _
    $region47: #{tpu_custom_call.1} parent=1 // pred_check_branch
      %98 = sbr.rel (0) target = $region49
    $region48: #{tpu_custom_call.1} parent=1 // pred_region
      %100 = dma.done [#allocation3], 256
    $region49: #{tpu_custom_call.1} parent=1 // pred_fallthru
      _
    // Predicated region
    $region50: #{tpu_custom_call.1} parent=1 // pred_check
      _
    $region51: #{tpu_custom_call.1} parent=1 // pred_check_branch
      %102 = sbr.rel (0) target = $region53
    $region52: #{tpu_custom_call.1} parent=1 // pred_region
      %104 = dma.done [#allocation6], 256
    $region53: #{tpu_custom_call.1} parent=1 // pred_fallthru
      _
    // Predicated region
    $region54: #{tpu_custom_call.1} parent=1 // pred_check
      _
    $region55: #{tpu_custom_call.1} parent=1 // pred_check_branch
      %106 = sbr.rel (0) target = $region57
    $region56: #{tpu_custom_call.1} parent=1 // pred_region
      %108 = dma.done [#allocation6], 512
    $region57: #{tpu_custom_call.1} parent=1 // pred_fallthru
      _
    // Predicated region
    $region58: #{tpu_custom_call.1} parent=1 // pred_check
      _
    $region59: #{tpu_custom_call.1} parent=1 // pred_check_branch
      %110 = sbr.rel (0) target = $region61
    $region60: #{tpu_custom_call.1} parent=1 // pred_region
      %112 = dma.done [#allocation9], 512
    $region61: #{tpu_custom_call.1} parent=1 // pred_fallthru
      _
    // Predicated region
    $region62: #{tpu_custom_call.1} parent=1 // pred_check
      _
    $region63: #{tpu_custom_call.1} parent=1 // pred_check_branch
      %114 = sbr.rel (0) target = $region65
    $region64: #{tpu_custom_call.1} parent=1 // pred_region
      %116 = dma.done [#allocation9], 512
    $region65: #{tpu_custom_call.1} parent=1 // pred_fallthru
      _
    %v117 = vld [vmem:[#allocation2] sm:$0xff]
    %v118 = vld [vmem:[#allocation2 + $0x8] sm:$0xff]
    %v119 = vld [vmem:[#allocation5] sm:$0xff]
    %v120 = vld [vmem:[#allocation5 + $0x8] sm:$0xff]
    %v121 = vld [vmem:[%s2] sm:$0xff]
    %v122 = vld [vmem:[%s2 + $0x8] sm:$0xff]
    %v123 = vld [vmem:[%s2 + $0x10] sm:$0xff]
    %v124 = vld [vmem:[%s2 + $0x18] sm:$0xff]
    %v125 = vld [vmem:[%s3] sm:$0x1]
    %v127 = vperm.slane %v125, 0
    %vm129 = vcmask 130048
    %v131 = vsel %vm129, %v117, 0
    %v134 = vsel %vm129, %v118, 0
    %136 = vmatpush.msra.mxu0 0.0
    %137 = vmatpush.msra.mxu0 0.0
    %138 = vmatpush.msra.mxu0 0.0
    %139 = vmatpush.msra.mxu0 0.0
    %140 = vmatpush.msra.mxu0 0.0
    %141 = vmatpush.msra.mxu0 0.0
    %142 = vmatpush.msra.mxu0 0.0
    %143 = vmatpush.msra.mxu0 0.0
    %144 = vmatpush.msra.mxu0 0.0
    %145 = vmatpush.msra.mxu0 0.0
    %146 = vmatpush.msra.mxu0 0.0
    %147 = vmatpush.msra.mxu0 0.0
    %148 = vmatpush.msra.mxu0 0.0
    %149 = vmatpush.msra.mxu0 0.0
    %150 = vmatpush.msra.mxu0 %v120
    %151 = vmatpush.msra.mxu0 %v119
    %152 = vmatmul.f32.gmra.mxu0 %v131
    %v153 = vpop.f32.mrf.mxu0
    %v154 = vadd.f32 %v127, %v153
    %155 = vmatmul.f32.gmra.mxu0 %v134
    %v156 = vpop.f32.mrf.mxu0
    %v157 = vadd.f32 %v127, %v156
    %158 = vdwg.mxu0
    %vm159 = vcmask 261120
    %v161 = vsel %vm159, 0.0, 0
    %163 = vmatpush.msra.mxu0 0.0
    %164 = vmatpush.msra.mxu0 0.0
    %165 = vmatpush.msra.mxu0 0.0
    %166 = vmatpush.msra.mxu0 0.0
    %167 = vmatpush.msra.mxu0 0.0
    %168 = vmatpush.msra.mxu0 0.0
    %169 = vmatpush.msra.mxu0 0.0
    %170 = vmatpush.msra.mxu0 0.0
    %171 = vmatpush.msra.mxu0 0.0
    %172 = vmatpush.msra.mxu0 0.0
    %173 = vmatpush.msra.mxu0 0.0
    %174 = vmatpush.msra.mxu0 0.0
    %175 = vmatpush.msra.mxu0 %v124
    %176 = vmatpush.msra.mxu0 %v123
    %177 = vmatpush.msra.mxu0 %v122
    %178 = vmatpush.msra.mxu0 %v121
    %179 = vmatmul.f32.gmra.mxu0 %v161
    %v180 = vpop.f32.mrf.mxu0
    %v181 = vadd.f32 0.0, %v180
    %182 = vdwg.mxu0
    %v183 = vadd.f32 %v154, %v181
    %v184 = vxor.u32 %v183, 2147483648
    %v185 = vmul.f32 %v184, 1.442695
    %v186 = vpow.pop %v185
    %v187 = vadd.f32 %v186, 1.0
    %v188 = vrcp.pop %v187
    %v189 = vmul.f32 %v187, %v188
    %v190 = vsub.f32 1.0, %v189
    %v191 = vmul.f32 %v188, %v190
    %v192 = vadd.f32 %v188, %v191
    %vm193 = vweird.f32 %v187
    %vm194 = vweird.f32 %v188
    %vm195 = vmor %vm193, %vm194
    %v196 = vsel %vm195, %v188, %v192
    %v197 = vand.u32 2147483647, %v187
    %vm198 = vcmp.eq.f32.partialorder %v197, 8.507059e+37
    %v199 = vand.u32 %v187, 2147483648
    %v200 = vor.u32 1.1754944e-38, %v199
    %v201 = vsel %vm198, %v200, %v196
    %v202 = vmul.f32 1.0, %v201
    %v203 = vtanh.pop %v183
    %v204 = vmul.f32 %v202, 0.0
    %206 = vrot.lane.b32.xlu0 %v203, 64
    %v207 = vpop.permute.xlu0 %206
    %v209 = vmul.f32 %v202, %v207
    %211 = vrot.lane.b32.xlu0 %v209, 32
    %v212 = vpop.permute.xlu0 %211
    %v214 = vadd.f32 %v204, %v212
    %v215 = vtanh.pop %v214
    %217 = vrot.lane.b32.xlu0 %v215, 64
    %v218 = vpop.permute.xlu0 %217
    %v220 = vmul.f32 %v202, %v218
    %222 = vrot.lane.b32.xlu0 %v220, 32
    %v223 = vpop.permute.xlu0 %222
    %v224 = vsel %vm159, %v223, 0
    %226 = vmatpush.msra.mxu0 0.0
    %227 = vmatpush.msra.mxu0 0.0
    %228 = vmatpush.msra.mxu0 0.0
    %229 = vmatpush.msra.mxu0 0.0
    %230 = vmatpush.msra.mxu0 0.0
    %231 = vmatpush.msra.mxu0 0.0
    %232 = vmatpush.msra.mxu0 0.0
    %233 = vmatpush.msra.mxu0 0.0
    %234 = vmatpush.msra.mxu0 0.0
    %235 = vmatpush.msra.mxu0 0.0
    %236 = vmatpush.msra.mxu0 0.0
    %237 = vmatpush.msra.mxu0 0.0
    %238 = vmatpush.msra.mxu0 %v124
    %239 = vmatpush.msra.mxu0 %v123
    %240 = vmatpush.msra.mxu0 %v122
    %241 = vmatpush.msra.mxu0 %v121
    %242 = vmatmul.f32.gmra.mxu0 %v224
    %v243 = vpop.f32.mrf.mxu0
    %v244 = vadd.f32 0.0, %v243
    %245 = vdwg.mxu0
    %v247 = vrot.slane %v244, 6
    %v249 = vadd.f32 %v154, %v247
    %v250 = vxor.u32 %v249, 2147483648
    %v251 = vmul.f32 %v250, 1.442695
    %v252 = vpow.pop %v251
    %v253 = vadd.f32 %v252, 1.0
    %v254 = vrcp.pop %v253
    %v255 = vmul.f32 %v253, %v254
    %v256 = vsub.f32 1.0, %v255
    %v257 = vmul.f32 %v254, %v256
    %v258 = vadd.f32 %v254, %v257
    %vm259 = vweird.f32 %v253
    %vm260 = vweird.f32 %v254
    %vm261 = vmor %vm259, %vm260
    %v262 = vsel %vm261, %v254, %v258
    %v263 = vand.u32 2147483647, %v253
    %vm264 = vcmp.eq.f32.partialorder %v263, 8.507059e+37
    %v265 = vand.u32 %v253, 2147483648
    %v266 = vor.u32 1.1754944e-38, %v265
    %v267 = vsel %vm264, %v266, %v262
    %v268 = vmul.f32 1.0, %v267
    %v269 = vtanh.pop %v249
    %v271 = vrot.slane %v214, 6
    %v273 = vmul.f32 %v268, %v271
    %275 = vrot.lane.b32.xlu0 %v269, 64
    %v276 = vpop.permute.xlu0 %275
    %v278 = vmul.f32 %v268, %v276
    %280 = vrot.lane.b32.xlu0 %v278, 32
    %v281 = vpop.permute.xlu0 %280
    %v283 = vadd.f32 %v273, %v281
    %v284 = vtanh.pop %v283
    %286 = vrot.lane.b32.xlu0 %v284, 64
    %v287 = vpop.permute.xlu0 %286
    %v289 = vmul.f32 %v268, %v287
    %v291 = vrot.slane %v289, 2
    %292 = vrot.lane.b32.xlu0 %v291, 32
    %v293 = vpop.permute.xlu0 %292
    %v294 = vsel %vm159, %v293, 0
    %296 = vmatpush.msra.mxu0 0.0
    %297 = vmatpush.msra.mxu0 0.0
    %298 = vmatpush.msra.mxu0 0.0
    %299 = vmatpush.msra.mxu0 0.0
    %300 = vmatpush.msra.mxu0 0.0
    %301 = vmatpush.msra.mxu0 0.0
    %302 = vmatpush.msra.mxu0 0.0
    %303 = vmatpush.msra.mxu0 0.0
    %304 = vmatpush.msra.mxu0 0.0
    %305 = vmatpush.msra.mxu0 0.0
    %306 = vmatpush.msra.mxu0 0.0
    %307 = vmatpush.msra.mxu0 0.0
    %308 = vmatpush.msra.mxu0 %v124
    %309 = vmatpush.msra.mxu0 %v123
    %310 = vmatpush.msra.mxu0 %v122
    %311 = vmatpush.msra.mxu0 %v121
    %312 = vmatmul.f32.gmra.mxu0 %v294
    %v313 = vpop.f32.mrf.mxu0
    %v314 = vadd.f32 0.0, %v313
    %315 = vdwg.mxu0
    %v317 = vrot.slane %v314, 4
    %v319 = vadd.f32 %v154, %v317
    %v320 = vxor.u32 %v319, 2147483648
    %v321 = vmul.f32 %v320, 1.442695
    %v322 = vpow.pop %v321
    %v323 = vadd.f32 %v322, 1.0
    %v324 = vrcp.pop %v323
    %v325 = vmul.f32 %v323, %v324
    %v326 = vsub.f32 1.0, %v325
    %v327 = vmul.f32 %v324, %v326
    %v328 = vadd.f32 %v324, %v327
    %vm329 = vweird.f32 %v323
    %vm330 = vweird.f32 %v324
    %vm331 = vmor %vm329, %vm330
    %v332 = vsel %vm331, %v324, %v328
    %v333 = vand.u32 2147483647, %v323
    %vm334 = vcmp.eq.f32.partialorder %v333, 8.507059e+37
    %v335 = vand.u32 %v323, 2147483648
    %v336 = vor.u32 1.1754944e-38, %v335
    %v337 = vsel %vm334, %v336, %v332
    %v338 = vmul.f32 1.0, %v337
    %v339 = vtanh.pop %v319
    %v341 = vrot.slane %v283, 6
    %v343 = vmul.f32 %v338, %v341
    %345 = vrot.lane.b32.xlu0 %v339, 64
    %v346 = vpop.permute.xlu0 %345
    %v348 = vmul.f32 %v338, %v346
    %350 = vrot.lane.b32.xlu0 %v348, 32
    %v351 = vpop.permute.xlu0 %350
    %v353 = vadd.f32 %v343, %v351
    %v354 = vtanh.pop %v353
    %356 = vrot.lane.b32.xlu0 %v354, 64
    %v357 = vpop.permute.xlu0 %356
    %v359 = vmul.f32 %v338, %v357
    %v361 = vrot.slane %v359, 4
    %362 = vrot.lane.b32.xlu0 %v361, 32
    %v363 = vpop.permute.xlu0 %362
    %v364 = vsel %vm159, %v363, 0
    %366 = vmatpush.msra.mxu0 0.0
    %367 = vmatpush.msra.mxu0 0.0
    %368 = vmatpush.msra.mxu0 0.0
    %369 = vmatpush.msra.mxu0 0.0
    %370 = vmatpush.msra.mxu0 0.0
    %371 = vmatpush.msra.mxu0 0.0
    %372 = vmatpush.msra.mxu0 0.0
    %373 = vmatpush.msra.mxu0 0.0
    %374 = vmatpush.msra.mxu0 0.0
    %375 = vmatpush.msra.mxu0 0.0
    %376 = vmatpush.msra.mxu0 0.0
    %377 = vmatpush.msra.mxu0 0.0
    %378 = vmatpush.msra.mxu0 %v124
    %379 = vmatpush.msra.mxu0 %v123
    %380 = vmatpush.msra.mxu0 %v122
    %381 = vmatpush.msra.mxu0 %v121
    %382 = vmatmul.f32.gmra.mxu0 %v364
    %v383 = vpop.f32.mrf.mxu0
    %v384 = vadd.f32 0.0, %v383
    %385 = vdwg.mxu0
    %v387 = vrot.slane %v384, 2
    %v389 = vadd.f32 %v154, %v387
    %v390 = vxor.u32 %v389, 2147483648
    %v391 = vmul.f32 %v390, 1.442695
    %v392 = vpow.pop %v391
    %v393 = vadd.f32 %v392, 1.0
    %v394 = vrcp.pop %v393
    %v395 = vmul.f32 %v393, %v394
    %v396 = vsub.f32 1.0, %v395
    %v397 = vmul.f32 %v394, %v396
    %v398 = vadd.f32 %v394, %v397
    %vm399 = vweird.f32 %v393
    %vm400 = vweird.f32 %v394
    %vm401 = vmor %vm399, %vm400
    %v402 = vsel %vm401, %v394, %v398
    %v403 = vand.u32 2147483647, %v393
    %vm404 = vcmp.eq.f32.partialorder %v403, 8.507059e+37
    %v405 = vand.u32 %v393, 2147483648
    %v406 = vor.u32 1.1754944e-38, %v405
    %v407 = vsel %vm404, %v406, %v402
    %v408 = vmul.f32 1.0, %v407
    %v409 = vtanh.pop %v389
    %v411 = vrot.slane %v353, 6
    %v413 = vmul.f32 %v408, %v411
    %415 = vrot.lane.b32.xlu0 %v409, 64
    %v416 = vpop.permute.xlu0 %415
    %v418 = vmul.f32 %v408, %v416
    %420 = vrot.lane.b32.xlu0 %v418, 32
    %v421 = vpop.permute.xlu0 %420
    %v423 = vadd.f32 %v413, %v421
    %v424 = vtanh.pop %v423
    %426 = vrot.lane.b32.xlu0 %v424, 64
    %v427 = vpop.permute.xlu0 %426
    %v429 = vmul.f32 %v408, %v427
    %v431 = vrot.slane %v429, 6
    %432 = vrot.lane.b32.xlu0 %v431, 32
    %v433 = vpop.permute.xlu0 %432
    %v434 = vsel %vm159, %v433, 0
    %436 = vmatpush.msra.mxu0 0.0
    %437 = vmatpush.msra.mxu0 0.0
    %438 = vmatpush.msra.mxu0 0.0
    %439 = vmatpush.msra.mxu0 0.0
    %440 = vmatpush.msra.mxu0 0.0
    %441 = vmatpush.msra.mxu0 0.0
    %442 = vmatpush.msra.mxu0 0.0
    %443 = vmatpush.msra.mxu0 0.0
    %444 = vmatpush.msra.mxu0 0.0
    %445 = vmatpush.msra.mxu0 0.0
    %446 = vmatpush.msra.mxu0 0.0
    %447 = vmatpush.msra.mxu0 0.0
    %448 = vmatpush.msra.mxu0 %v124
    %449 = vmatpush.msra.mxu0 %v123
    %450 = vmatpush.msra.mxu0 %v122
    %451 = vmatpush.msra.mxu0 %v121
    %452 = vmatmul.f32.gmra.mxu0 %v434
    %v453 = vpop.f32.mrf.mxu0
    %v454 = vadd.f32 0.0, %v453
    %455 = vdwg.mxu0
    %v456 = vadd.f32 %v157, %v454
    %v457 = vxor.u32 %v456, 2147483648
    %v458 = vmul.f32 %v457, 1.442695
    %v459 = vpow.pop %v458
    %v460 = vadd.f32 %v459, 1.0
    %v461 = vrcp.pop %v460
    %v462 = vmul.f32 %v460, %v461
    %v463 = vsub.f32 1.0, %v462
    %v464 = vmul.f32 %v461, %v463
    %v465 = vadd.f32 %v461, %v464
    %vm466 = vweird.f32 %v460
    %vm467 = vweird.f32 %v461
    %vm468 = vmor %vm466, %vm467
    %v469 = vsel %vm468, %v461, %v465
    %v470 = vand.u32 2147483647, %v460
    %vm471 = vcmp.eq.f32.partialorder %v470, 8.507059e+37
    %v472 = vand.u32 %v460, 2147483648
    %v473 = vor.u32 1.1754944e-38, %v472
    %v474 = vsel %vm471, %v473, %v469
    %v475 = vmul.f32 1.0, %v474
    %v476 = vtanh.pop %v456
    %v478 = vrot.slane %v423, 6
    %v480 = vmul.f32 %v475, %v478
    %482 = vrot.lane.b32.xlu0 %v476, 64
    %v483 = vpop.permute.xlu0 %482
    %v485 = vmul.f32 %v475, %v483
    %487 = vrot.lane.b32.xlu0 %v485, 32
    %v488 = vpop.permute.xlu0 %487
    %v490 = vadd.f32 %v480, %v488
    %v491 = vtanh.pop %v490
    %493 = vrot.lane.b32.xlu0 %v491, 64
    %v494 = vpop.permute.xlu0 %493
    %v496 = vmul.f32 %v475, %v494
    %498 = vrot.lane.b32.xlu0 %v496, 32
    %v499 = vpop.permute.xlu0 %498
    %v500 = vsel %vm159, %v499, 0
    %502 = vmatpush.msra.mxu0 0.0
    %503 = vmatpush.msra.mxu0 0.0
    %504 = vmatpush.msra.mxu0 0.0
    %505 = vmatpush.msra.mxu0 0.0
    %506 = vmatpush.msra.mxu0 0.0
    %507 = vmatpush.msra.mxu0 0.0
    %508 = vmatpush.msra.mxu0 0.0
    %509 = vmatpush.msra.mxu0 0.0
    %510 = vmatpush.msra.mxu0 0.0
    %511 = vmatpush.msra.mxu0 0.0
    %512 = vmatpush.msra.mxu0 0.0
    %513 = vmatpush.msra.mxu0 0.0
    %514 = vmatpush.msra.mxu0 %v124
    %515 = vmatpush.msra.mxu0 %v123
    %516 = vmatpush.msra.mxu0 %v122
    %517 = vmatpush.msra.mxu0 %v121
    %518 = vmatmul.f32.gmra.mxu0 %v500
    %v519 = vpop.f32.mrf.mxu0
    %v520 = vadd.f32 0.0, %v519
    %521 = vdwg.mxu0
    %v523 = vrot.slane %v520, 6
    %v525 = vadd.f32 %v157, %v523
    %v526 = vxor.u32 %v525, 2147483648
    %v527 = vmul.f32 %v526, 1.442695
    %v528 = vpow.pop %v527
    %v529 = vadd.f32 %v528, 1.0
    %v530 = vrcp.pop %v529
    %v531 = vmul.f32 %v529, %v530
    %v532 = vsub.f32 1.0, %v531
    %v533 = vmul.f32 %v530, %v532
    %v534 = vadd.f32 %v530, %v533
    %vm535 = vweird.f32 %v529
    %vm536 = vweird.f32 %v530
    %vm537 = vmor %vm535, %vm536
    %v538 = vsel %vm537, %v530, %v534
    %v539 = vand.u32 2147483647, %v529
    %vm540 = vcmp.eq.f32.partialorder %v539, 8.507059e+37
    %v541 = vand.u32 %v529, 2147483648
    %v542 = vor.u32 1.1754944e-38, %v541
    %v543 = vsel %vm540, %v542, %v538
    %v544 = vmul.f32 1.0, %v543
    %v545 = vtanh.pop %v525
    %v547 = vrot.slane %v490, 6
    %v549 = vmul.f32 %v544, %v547
    %551 = vrot.lane.b32.xlu0 %v545, 64
    %v552 = vpop.permute.xlu0 %551
    %v554 = vmul.f32 %v544, %v552
    %556 = vrot.lane.b32.xlu0 %v554, 32
    %v557 = vpop.permute.xlu0 %556
    %v559 = vadd.f32 %v549, %v557
    %v560 = vtanh.pop %v559
    %562 = vrot.lane.b32.xlu0 %v560, 64
    %v563 = vpop.permute.xlu0 %562
    %v565 = vmul.f32 %v544, %v563
    %v567 = vrot.slane %v565, 2
    %568 = vrot.lane.b32.xlu0 %v567, 32
    %v569 = vpop.permute.xlu0 %568
    %v570 = vsel %vm159, %v569, 0
    %572 = vmatpush.msra.mxu0 0.0
    %573 = vmatpush.msra.mxu0 0.0
    %574 = vmatpush.msra.mxu0 0.0
    %575 = vmatpush.msra.mxu0 0.0
    %576 = vmatpush.msra.mxu0 0.0
    %577 = vmatpush.msra.mxu0 0.0
    %578 = vmatpush.msra.mxu0 0.0
    %579 = vmatpush.msra.mxu0 0.0
    %580 = vmatpush.msra.mxu0 0.0
    %581 = vmatpush.msra.mxu0 0.0
    %582 = vmatpush.msra.mxu0 0.0
    %583 = vmatpush.msra.mxu0 0.0
    %584 = vmatpush.msra.mxu0 %v124
    %585 = vmatpush.msra.mxu0 %v123
    %586 = vmatpush.msra.mxu0 %v122
    %587 = vmatpush.msra.mxu0 %v121
    %588 = vmatmul.f32.gmra.mxu0 %v570
    %v589 = vpop.f32.mrf.mxu0
    %v590 = vadd.f32 0.0, %v589
    %591 = vdwg.mxu0
    %v593 = vrot.slane %v590, 4
    %v595 = vadd.f32 %v157, %v593
    %v596 = vxor.u32 %v595, 2147483648
    %v597 = vmul.f32 %v596, 1.442695
    %v598 = vpow.pop %v597
    %v599 = vadd.f32 %v598, 1.0
    %v600 = vrcp.pop %v599
    %v601 = vmul.f32 %v599, %v600
    %v602 = vsub.f32 1.0, %v601
    %v603 = vmul.f32 %v600, %v602
    %v604 = vadd.f32 %v600, %v603
    %vm605 = vweird.f32 %v599
    %vm606 = vweird.f32 %v600
    %vm607 = vmor %vm605, %vm606
    %v608 = vsel %vm607, %v600, %v604
    %v609 = vand.u32 2147483647, %v599
    %vm610 = vcmp.eq.f32.partialorder %v609, 8.507059e+37
    %v611 = vand.u32 %v599, 2147483648
    %v612 = vor.u32 1.1754944e-38, %v611
    %v613 = vsel %vm610, %v612, %v608
    %v614 = vmul.f32 1.0, %v613
    %v615 = vtanh.pop %v595
    %v617 = vrot.slane %v559, 6
    %v619 = vmul.f32 %v614, %v617
    %621 = vrot.lane.b32.xlu0 %v615, 64
    %v622 = vpop.permute.xlu0 %621
    %v624 = vmul.f32 %v614, %v622
    %626 = vrot.lane.b32.xlu0 %v624, 32
    %v627 = vpop.permute.xlu0 %626
    %v629 = vadd.f32 %v619, %v627
    %v630 = vtanh.pop %v629
    %632 = vrot.lane.b32.xlu0 %v630, 64
    %v633 = vpop.permute.xlu0 %632
    %v635 = vmul.f32 %v614, %v633
    %v637 = vrot.slane %v635, 4
    %638 = vrot.lane.b32.xlu0 %v637, 32
    %v639 = vpop.permute.xlu0 %638
    %v640 = vsel %vm159, %v639, 0
    %642 = vmatpush.msra.mxu0 0.0
    %643 = vmatpush.msra.mxu0 0.0
    %644 = vmatpush.msra.mxu0 0.0
    %645 = vmatpush.msra.mxu0 0.0
    %646 = vmatpush.msra.mxu0 0.0
    %647 = vmatpush.msra.mxu0 0.0
    %648 = vmatpush.msra.mxu0 0.0
    %649 = vmatpush.msra.mxu0 0.0
    %650 = vmatpush.msra.mxu0 0.0
    %651 = vmatpush.msra.mxu0 0.0
    %652 = vmatpush.msra.mxu0 0.0
    %653 = vmatpush.msra.mxu0 0.0
    %654 = vmatpush.msra.mxu0 %v124
    %655 = vmatpush.msra.mxu0 %v123
    %656 = vmatpush.msra.mxu0 %v122
    %657 = vmatpush.msra.mxu0 %v121
    %658 = vmatmul.f32.gmra.mxu0 %v640
    %v659 = vpop.f32.mrf.mxu0
    %v660 = vadd.f32 0.0, %v659
    %661 = vdwg.mxu0
    %v663 = vrot.slane %v660, 2
    %v665 = vadd.f32 %v157, %v663
    %v666 = vxor.u32 %v665, 2147483648
    %v667 = vmul.f32 %v666, 1.442695
    %v668 = vpow.pop %v667
    %v669 = vadd.f32 %v668, 1.0
    %v670 = vrcp.pop %v669
    %v671 = vmul.f32 %v669, %v670
    %v672 = vsub.f32 1.0, %v671
    %v673 = vmul.f32 %v670, %v672
    %v674 = vadd.f32 %v670, %v673
    %vm675 = vweird.f32 %v669
    %vm676 = vweird.f32 %v670
    %vm677 = vmor %vm675, %vm676
    %v678 = vsel %vm677, %v670, %v674
    %v679 = vand.u32 2147483647, %v669
    %vm680 = vcmp.eq.f32.partialorder %v679, 8.507059e+37
    %v681 = vand.u32 %v669, 2147483648
    %v682 = vor.u32 1.1754944e-38, %v681
    %v683 = vsel %vm680, %v682, %v678
    %v684 = vmul.f32 1.0, %v683
    %v685 = vtanh.pop %v665
    %v687 = vrot.slane %v629, 6
    %v689 = vmul.f32 %v684, %v687
    %691 = vrot.lane.b32.xlu0 %v685, 64
    %v692 = vpop.permute.xlu0 %691
    %v694 = vmul.f32 %v684, %v692
    %696 = vrot.lane.b32.xlu0 %v694, 32
    %v697 = vpop.permute.xlu0 %696
    %v699 = vadd.f32 %v689, %v697
    %v700 = vtanh.pop %v699
    %702 = vrot.lane.b32.xlu0 %v700, 64
    %v703 = vpop.permute.xlu0 %702
    %v705 = vmul.f32 %v684, %v703
    %vm706 = vcmask 1041408
    %v707 = vsel %vm706, %v220, %v289
    %vm708 = vcmask 1043456
    %v709 = vsel %vm708, %v707, %v359
    %vm710 = vcmask 1045504
    %v711 = vsel %vm710, %v709, %v429
    %v712 = vsel %vm706, %v496, %v565
    %v713 = vsel %vm708, %v712, %v635
    %v714 = vsel %vm710, %v713, %v705
    %v715 = vld [vmem:[#allocation7] sm:$0xff]
    %v716 = vld [vmem:[#allocation7 + $0x8] sm:$0xff]
    %v717 = vld [vmem:[#allocation7 + $0x10] sm:$0xff]
    %v718 = vld [vmem:[#allocation7 + $0x18] sm:$0xff]
    %v719 = vld [vmem:[#allocation8] sm:$0xff]
    %v720 = vld [vmem:[#allocation8 + $0x8] sm:$0xff]
    %v721 = vld [vmem:[#allocation8 + $0x10] sm:$0xff]
    %v722 = vld [vmem:[#allocation8 + $0x18] sm:$0xff]
    %v723 = vld [vmem:[%s6] sm:$0x1]
    %v725 = vperm.slane %v723, 0
    %729 = vrot.lane.b32.xlu0 %v711, 32
    %v730 = vpop.permute.xlu0 %729
    %731 = vrot.lane.b32.xlu0 %v714, 32
    %v732 = vpop.permute.xlu0 %731
    %v733 = vsel %vm159, %v730, 0
    %v735 = vsel %vm159, %v732, 0
    %737 = vmatpush.msra.mxu0 0.0
    %738 = vmatpush.msra.mxu0 0.0
    %739 = vmatpush.msra.mxu0 0.0
    %740 = vmatpush.msra.mxu0 0.0
    %741 = vmatpush.msra.mxu0 0.0
    %742 = vmatpush.msra.mxu0 0.0
    %743 = vmatpush.msra.mxu0 0.0
    %744 = vmatpush.msra.mxu0 0.0
    %745 = vmatpush.msra.mxu0 0.0
    %746 = vmatpush.msra.mxu0 0.0
    %747 = vmatpush.msra.mxu0 0.0
    %748 = vmatpush.msra.mxu0 0.0
    %749 = vmatpush.msra.mxu0 %v718
    %750 = vmatpush.msra.mxu0 %v717
    %751 = vmatpush.msra.mxu0 %v716
    %752 = vmatpush.msra.mxu0 %v715
    %753 = vmatmul.f32.gmra.mxu0 %v733
    %v754 = vpop.f32.mrf.mxu0
    %v755 = vadd.f32 %v725, %v754
    %756 = vmatmul.f32.gmra.mxu0 %v735
    %v757 = vpop.f32.mrf.mxu0
    %v758 = vadd.f32 %v725, %v757
    %759 = vdwg.mxu0
    %760 = vmatpush.msra.mxu0 0.0
    %761 = vmatpush.msra.mxu0 0.0
    %762 = vmatpush.msra.mxu0 0.0
    %763 = vmatpush.msra.mxu0 0.0
    %764 = vmatpush.msra.mxu0 0.0
    %765 = vmatpush.msra.mxu0 0.0
    %766 = vmatpush.msra.mxu0 0.0
    %767 = vmatpush.msra.mxu0 0.0
    %768 = vmatpush.msra.mxu0 0.0
    %769 = vmatpush.msra.mxu0 0.0
    %770 = vmatpush.msra.mxu0 0.0
    %771 = vmatpush.msra.mxu0 0.0
    %772 = vmatpush.msra.mxu0 %v722
    %773 = vmatpush.msra.mxu0 %v721
    %774 = vmatpush.msra.mxu0 %v720
    %775 = vmatpush.msra.mxu0 %v719
    %776 = vmatmul.f32.gmra.mxu0 %v161
    %v777 = vpop.f32.mrf.mxu0
    %v778 = vadd.f32 0.0, %v777
    %779 = vdwg.mxu0
    %v780 = vadd.f32 %v755, %v778
    %v781 = vxor.u32 %v780, 2147483648
    %v782 = vmul.f32 %v781, 1.442695
    %v783 = vpow.pop %v782
    %v784 = vadd.f32 %v783, 1.0
    %v785 = vrcp.pop %v784
    %v786 = vmul.f32 %v784, %v785
    %v787 = vsub.f32 1.0, %v786
    %v788 = vmul.f32 %v785, %v787
    %v789 = vadd.f32 %v785, %v788
    %vm790 = vweird.f32 %v784
    %vm791 = vweird.f32 %v785
    %vm792 = vmor %vm790, %vm791
    %v793 = vsel %vm792, %v785, %v789
    %v794 = vand.u32 2147483647, %v784
    %vm795 = vcmp.eq.f32.partialorder %v794, 8.507059e+37
    %v796 = vand.u32 %v784, 2147483648
    %v797 = vor.u32 1.1754944e-38, %v796
    %v798 = vsel %vm795, %v797, %v793
    %v799 = vmul.f32 1.0, %v798
    %v800 = vtanh.pop %v780
    %v801 = vmul.f32 %v799, 0.0
    %803 = vrot.lane.b32.xlu0 %v800, 64
    %v804 = vpop.permute.xlu0 %803
    %v806 = vmul.f32 %v799, %v804
    %808 = vrot.lane.b32.xlu0 %v806, 32
    %v809 = vpop.permute.xlu0 %808
    %v811 = vadd.f32 %v801, %v809
    %v812 = vtanh.pop %v811
    %814 = vrot.lane.b32.xlu0 %v812, 64
    %v815 = vpop.permute.xlu0 %814
    %v817 = vmul.f32 %v799, %v815
    %819 = vrot.lane.b32.xlu0 %v817, 32
    %v820 = vpop.permute.xlu0 %819
    %v821 = vsel %vm159, %v820, 0
    %823 = vmatpush.msra.mxu0 0.0
    %824 = vmatpush.msra.mxu0 0.0
    %825 = vmatpush.msra.mxu0 0.0
    %826 = vmatpush.msra.mxu0 0.0
    %827 = vmatpush.msra.mxu0 0.0
    %828 = vmatpush.msra.mxu0 0.0
    %829 = vmatpush.msra.mxu0 0.0
    %830 = vmatpush.msra.mxu0 0.0
    %831 = vmatpush.msra.mxu0 0.0
    %832 = vmatpush.msra.mxu0 0.0
    %833 = vmatpush.msra.mxu0 0.0
    %834 = vmatpush.msra.mxu0 0.0
    %835 = vmatpush.msra.mxu0 %v722
    %836 = vmatpush.msra.mxu0 %v721
    %837 = vmatpush.msra.mxu0 %v720
    %838 = vmatpush.msra.mxu0 %v719
    %839 = vmatmul.f32.gmra.mxu0 %v821
    %v840 = vpop.f32.mrf.mxu0
    %v841 = vadd.f32 0.0, %v840
    %842 = vdwg.mxu0
    %v844 = vrot.slane %v841, 6
    %v846 = vadd.f32 %v755, %v844
    %v847 = vxor.u32 %v846, 2147483648
    %v848 = vmul.f32 %v847, 1.442695
    %v849 = vpow.pop %v848
    %v850 = vadd.f32 %v849, 1.0
    %v851 = vrcp.pop %v850
    %v852 = vmul.f32 %v850, %v851
    %v853 = vsub.f32 1.0, %v852
    %v854 = vmul.f32 %v851, %v853
    %v855 = vadd.f32 %v851, %v854
    %vm856 = vweird.f32 %v850
    %vm857 = vweird.f32 %v851
    %vm858 = vmor %vm856, %vm857
    %v859 = vsel %vm858, %v851, %v855
    %v860 = vand.u32 2147483647, %v850
    %vm861 = vcmp.eq.f32.partialorder %v860, 8.507059e+37
    %v862 = vand.u32 %v850, 2147483648
    %v863 = vor.u32 1.1754944e-38, %v862
    %v864 = vsel %vm861, %v863, %v859
    %v865 = vmul.f32 1.0, %v864
    %v866 = vtanh.pop %v846
    %v868 = vrot.slane %v811, 6
    %v870 = vmul.f32 %v865, %v868
    %872 = vrot.lane.b32.xlu0 %v866, 64
    %v873 = vpop.permute.xlu0 %872
    %v875 = vmul.f32 %v865, %v873
    %877 = vrot.lane.b32.xlu0 %v875, 32
    %v878 = vpop.permute.xlu0 %877
    %v880 = vadd.f32 %v870, %v878
    %v881 = vtanh.pop %v880
    %883 = vrot.lane.b32.xlu0 %v881, 64
    %v884 = vpop.permute.xlu0 %883
    %v886 = vmul.f32 %v865, %v884
    %v888 = vrot.slane %v886, 2
    %889 = vrot.lane.b32.xlu0 %v888, 32
    %v890 = vpop.permute.xlu0 %889
    %v891 = vsel %vm159, %v890, 0
    %893 = vmatpush.msra.mxu0 0.0
    %894 = vmatpush.msra.mxu0 0.0
    %895 = vmatpush.msra.mxu0 0.0
    %896 = vmatpush.msra.mxu0 0.0
    %897 = vmatpush.msra.mxu0 0.0
    %898 = vmatpush.msra.mxu0 0.0
    %899 = vmatpush.msra.mxu0 0.0
    %900 = vmatpush.msra.mxu0 0.0
    %901 = vmatpush.msra.mxu0 0.0
    %902 = vmatpush.msra.mxu0 0.0
    %903 = vmatpush.msra.mxu0 0.0
    %904 = vmatpush.msra.mxu0 0.0
    %905 = vmatpush.msra.mxu0 %v722
    %906 = vmatpush.msra.mxu0 %v721
    %907 = vmatpush.msra.mxu0 %v720
    %908 = vmatpush.msra.mxu0 %v719
    %909 = vmatmul.f32.gmra.mxu0 %v891
    %v910 = vpop.f32.mrf.mxu0
    %v911 = vadd.f32 0.0, %v910
    %912 = vdwg.mxu0
    %v914 = vrot.slane %v911, 4
    %v916 = vadd.f32 %v755, %v914
    %v917 = vxor.u32 %v916, 2147483648
    %v918 = vmul.f32 %v917, 1.442695
    %v919 = vpow.pop %v918
    %v920 = vadd.f32 %v919, 1.0
    %v921 = vrcp.pop %v920
    %v922 = vmul.f32 %v920, %v921
    %v923 = vsub.f32 1.0, %v922
    %v924 = vmul.f32 %v921, %v923
    %v925 = vadd.f32 %v921, %v924
    %vm926 = vweird.f32 %v920
    %vm927 = vweird.f32 %v921
    %vm928 = vmor %vm926, %vm927
    %v929 = vsel %vm928, %v921, %v925
    %v930 = vand.u32 2147483647, %v920
    %vm931 = vcmp.eq.f32.partialorder %v930, 8.507059e+37
    %v932 = vand.u32 %v920, 2147483648
    %v933 = vor.u32 1.1754944e-38, %v932
    %v934 = vsel %vm931, %v933, %v929
    %v935 = vmul.f32 1.0, %v934
    %v936 = vtanh.pop %v916
    %v938 = vrot.slane %v880, 6
    %v940 = vmul.f32 %v935, %v938
    %942 = vrot.lane.b32.xlu0 %v936, 64
    %v943 = vpop.permute.xlu0 %942
    %v945 = vmul.f32 %v935, %v943
    %947 = vrot.lane.b32.xlu0 %v945, 32
    %v948 = vpop.permute.xlu0 %947
    %v950 = vadd.f32 %v940, %v948
    %v951 = vtanh.pop %v950
    %953 = vrot.lane.b32.xlu0 %v951, 64
    %v954 = vpop.permute.xlu0 %953
    %v956 = vmul.f32 %v935, %v954
    %v958 = vrot.slane %v956, 4
    %959 = vrot.lane.b32.xlu0 %v958, 32
    %v960 = vpop.permute.xlu0 %959
    %v961 = vsel %vm159, %v960, 0
    %963 = vmatpush.msra.mxu0 0.0
    %964 = vmatpush.msra.mxu0 0.0
    %965 = vmatpush.msra.mxu0 0.0
    %966 = vmatpush.msra.mxu0 0.0
    %967 = vmatpush.msra.mxu0 0.0
    %968 = vmatpush.msra.mxu0 0.0
    %969 = vmatpush.msra.mxu0 0.0
    %970 = vmatpush.msra.mxu0 0.0
    %971 = vmatpush.msra.mxu0 0.0
    %972 = vmatpush.msra.mxu0 0.0
    %973 = vmatpush.msra.mxu0 0.0
    %974 = vmatpush.msra.mxu0 0.0
    %975 = vmatpush.msra.mxu0 %v722
    %976 = vmatpush.msra.mxu0 %v721
    %977 = vmatpush.msra.mxu0 %v720
    %978 = vmatpush.msra.mxu0 %v719
    %979 = vmatmul.f32.gmra.mxu0 %v961
    %v980 = vpop.f32.mrf.mxu0
    %v981 = vadd.f32 0.0, %v980
    %982 = vdwg.mxu0
    %v984 = vrot.slane %v981, 2
    %v986 = vadd.f32 %v755, %v984
    %v987 = vxor.u32 %v986, 2147483648
    %v988 = vmul.f32 %v987, 1.442695
    %v989 = vpow.pop %v988
    %v990 = vadd.f32 %v989, 1.0
    %v991 = vrcp.pop %v990
    %v992 = vmul.f32 %v990, %v991
    %v993 = vsub.f32 1.0, %v992
    %v994 = vmul.f32 %v991, %v993
    %v995 = vadd.f32 %v991, %v994
    %vm996 = vweird.f32 %v990
    %vm997 = vweird.f32 %v991
    %vm998 = vmor %vm996, %vm997
    %v999 = vsel %vm998, %v991, %v995
    %v1000 = vand.u32 2147483647, %v990
    %vm1001 = vcmp.eq.f32.partialorder %v1000, 8.507059e+37
    %v1002 = vand.u32 %v990, 2147483648
    %v1003 = vor.u32 1.1754944e-38, %v1002
    %v1004 = vsel %vm1001, %v1003, %v999
    %v1005 = vmul.f32 1.0, %v1004
    %v1006 = vtanh.pop %v986
    %v1008 = vrot.slane %v950, 6
    %v1010 = vmul.f32 %v1005, %v1008
    %1012 = vrot.lane.b32.xlu0 %v1006, 64
    %v1013 = vpop.permute.xlu0 %1012
    %v1015 = vmul.f32 %v1005, %v1013
    %1017 = vrot.lane.b32.xlu0 %v1015, 32
    %v1018 = vpop.permute.xlu0 %1017
    %v1020 = vadd.f32 %v1010, %v1018
    %v1021 = vtanh.pop %v1020
    %1023 = vrot.lane.b32.xlu0 %v1021, 64
    %v1024 = vpop.permute.xlu0 %1023
    %v1026 = vmul.f32 %v1005, %v1024
    %v1028 = vrot.slane %v1026, 6
    %1029 = vrot.lane.b32.xlu0 %v1028, 32
    %v1030 = vpop.permute.xlu0 %1029
    %v1031 = vsel %vm159, %v1030, 0
    %1033 = vmatpush.msra.mxu0 0.0
    %1034 = vmatpush.msra.mxu0 0.0
    %1035 = vmatpush.msra.mxu0 0.0
    %1036 = vmatpush.msra.mxu0 0.0
    %1037 = vmatpush.msra.mxu0 0.0
    %1038 = vmatpush.msra.mxu0 0.0
    %1039 = vmatpush.msra.mxu0 0.0
    %1040 = vmatpush.msra.mxu0 0.0
    %1041 = vmatpush.msra.mxu0 0.0
    %1042 = vmatpush.msra.mxu0 0.0
    %1043 = vmatpush.msra.mxu0 0.0
    %1044 = vmatpush.msra.mxu0 0.0
    %1045 = vmatpush.msra.mxu0 %v722
    %1046 = vmatpush.msra.mxu0 %v721
    %1047 = vmatpush.msra.mxu0 %v720
    %1048 = vmatpush.msra.mxu0 %v719
    %1049 = vmatmul.f32.gmra.mxu0 %v1031
    %v1050 = vpop.f32.mrf.mxu0
    %v1051 = vadd.f32 0.0, %v1050
    %1052 = vdwg.mxu0
    %v1053 = vadd.f32 %v758, %v1051
    %v1054 = vxor.u32 %v1053, 2147483648
    %v1055 = vmul.f32 %v1054, 1.442695
    %v1056 = vpow.pop %v1055
    %v1057 = vadd.f32 %v1056, 1.0
    %v1058 = vrcp.pop %v1057
    %v1059 = vmul.f32 %v1057, %v1058
    %v1060 = vsub.f32 1.0, %v1059
    %v1061 = vmul.f32 %v1058, %v1060
    %v1062 = vadd.f32 %v1058, %v1061
    %vm1063 = vweird.f32 %v1057
    %vm1064 = vweird.f32 %v1058
    %vm1065 = vmor %vm1063, %vm1064
    %v1066 = vsel %vm1065, %v1058, %v1062
    %v1067 = vand.u32 2147483647, %v1057
    %vm1068 = vcmp.eq.f32.partialorder %v1067, 8.507059e+37
    %v1069 = vand.u32 %v1057, 2147483648
    %v1070 = vor.u32 1.1754944e-38, %v1069
    %v1071 = vsel %vm1068, %v1070, %v1066
    %v1072 = vmul.f32 1.0, %v1071
    %v1073 = vtanh.pop %v1053
    %v1075 = vrot.slane %v1020, 6
    %v1077 = vmul.f32 %v1072, %v1075
    %1079 = vrot.lane.b32.xlu0 %v1073, 64
    %v1080 = vpop.permute.xlu0 %1079
    %v1082 = vmul.f32 %v1072, %v1080
    %1084 = vrot.lane.b32.xlu0 %v1082, 32
    %v1085 = vpop.permute.xlu0 %1084
    %v1087 = vadd.f32 %v1077, %v1085
    %v1088 = vtanh.pop %v1087
    %1090 = vrot.lane.b32.xlu0 %v1088, 64
    %v1091 = vpop.permute.xlu0 %1090
    %v1093 = vmul.f32 %v1072, %v1091
    %1095 = vrot.lane.b32.xlu0 %v1093, 32
    %v1096 = vpop.permute.xlu0 %1095
    %v1097 = vsel %vm159, %v1096, 0
    %1099 = vmatpush.msra.mxu0 0.0
    %1100 = vmatpush.msra.mxu0 0.0
    %1101 = vmatpush.msra.mxu0 0.0
    %1102 = vmatpush.msra.mxu0 0.0
    %1103 = vmatpush.msra.mxu0 0.0
    %1104 = vmatpush.msra.mxu0 0.0
    %1105 = vmatpush.msra.mxu0 0.0
    %1106 = vmatpush.msra.mxu0 0.0
    %1107 = vmatpush.msra.mxu0 0.0
    %1108 = vmatpush.msra.mxu0 0.0
    %1109 = vmatpush.msra.mxu0 0.0
    %1110 = vmatpush.msra.mxu0 0.0
    %1111 = vmatpush.msra.mxu0 %v722
    %1112 = vmatpush.msra.mxu0 %v721
    %1113 = vmatpush.msra.mxu0 %v720
    %1114 = vmatpush.msra.mxu0 %v719
    %1115 = vmatmul.f32.gmra.mxu0 %v1097
    %v1116 = vpop.f32.mrf.mxu0
    %v1117 = vadd.f32 0.0, %v1116
    %1118 = vdwg.mxu0
    %v1120 = vrot.slane %v1117, 6
    %v1122 = vadd.f32 %v758, %v1120
    %v1123 = vxor.u32 %v1122, 2147483648
    %v1124 = vmul.f32 %v1123, 1.442695
    %v1125 = vpow.pop %v1124
    %v1126 = vadd.f32 %v1125, 1.0
    %v1127 = vrcp.pop %v1126
    %v1128 = vmul.f32 %v1126, %v1127
    %v1129 = vsub.f32 1.0, %v1128
    %v1130 = vmul.f32 %v1127, %v1129
    %v1131 = vadd.f32 %v1127, %v1130
    %vm1132 = vweird.f32 %v1126
    %vm1133 = vweird.f32 %v1127
    %vm1134 = vmor %vm1132, %vm1133
    %v1135 = vsel %vm1134, %v1127, %v1131
    %v1136 = vand.u32 2147483647, %v1126
    %vm1137 = vcmp.eq.f32.partialorder %v1136, 8.507059e+37
    %v1138 = vand.u32 %v1126, 2147483648
    %v1139 = vor.u32 1.1754944e-38, %v1138
    %v1140 = vsel %vm1137, %v1139, %v1135
    %v1141 = vmul.f32 1.0, %v1140
    %v1142 = vtanh.pop %v1122
    %v1144 = vrot.slane %v1087, 6
    %v1146 = vmul.f32 %v1141, %v1144
    %1148 = vrot.lane.b32.xlu0 %v1142, 64
    %v1149 = vpop.permute.xlu0 %1148
    %v1151 = vmul.f32 %v1141, %v1149
    %1153 = vrot.lane.b32.xlu0 %v1151, 32
    %v1154 = vpop.permute.xlu0 %1153
    %v1156 = vadd.f32 %v1146, %v1154
    %v1157 = vtanh.pop %v1156
    %1159 = vrot.lane.b32.xlu0 %v1157, 64
    %v1160 = vpop.permute.xlu0 %1159
    %v1162 = vmul.f32 %v1141, %v1160
    %v1164 = vrot.slane %v1162, 2
    %1165 = vrot.lane.b32.xlu0 %v1164, 32
    %v1166 = vpop.permute.xlu0 %1165
    %v1167 = vsel %vm159, %v1166, 0
    %1169 = vmatpush.msra.mxu0 0.0
    %1170 = vmatpush.msra.mxu0 0.0
    %1171 = vmatpush.msra.mxu0 0.0
    %1172 = vmatpush.msra.mxu0 0.0
    %1173 = vmatpush.msra.mxu0 0.0
    %1174 = vmatpush.msra.mxu0 0.0
    %1175 = vmatpush.msra.mxu0 0.0
    %1176 = vmatpush.msra.mxu0 0.0
    %1177 = vmatpush.msra.mxu0 0.0
    %1178 = vmatpush.msra.mxu0 0.0
    %1179 = vmatpush.msra.mxu0 0.0
    %1180 = vmatpush.msra.mxu0 0.0
    %1181 = vmatpush.msra.mxu0 %v722
    %1182 = vmatpush.msra.mxu0 %v721
    %1183 = vmatpush.msra.mxu0 %v720
    %1184 = vmatpush.msra.mxu0 %v719
    %1185 = vmatmul.f32.gmra.mxu0 %v1167
    %v1186 = vpop.f32.mrf.mxu0
    %v1187 = vadd.f32 0.0, %v1186
    %1188 = vdwg.mxu0
    %v1190 = vrot.slane %v1187, 4
    %v1192 = vadd.f32 %v758, %v1190
    %v1193 = vxor.u32 %v1192, 2147483648
    %v1194 = vmul.f32 %v1193, 1.442695
    %v1195 = vpow.pop %v1194
    %v1196 = vadd.f32 %v1195, 1.0
    %v1197 = vrcp.pop %v1196
    %v1198 = vmul.f32 %v1196, %v1197
    %v1199 = vsub.f32 1.0, %v1198
    %v1200 = vmul.f32 %v1197, %v1199
    %v1201 = vadd.f32 %v1197, %v1200
    %vm1202 = vweird.f32 %v1196
    %vm1203 = vweird.f32 %v1197
    %vm1204 = vmor %vm1202, %vm1203
    %v1205 = vsel %vm1204, %v1197, %v1201
    %v1206 = vand.u32 2147483647, %v1196
    %vm1207 = vcmp.eq.f32.partialorder %v1206, 8.507059e+37
    %v1208 = vand.u32 %v1196, 2147483648
    %v1209 = vor.u32 1.1754944e-38, %v1208
    %v1210 = vsel %vm1207, %v1209, %v1205
    %v1211 = vmul.f32 1.0, %v1210
    %v1212 = vtanh.pop %v1192
    %v1214 = vrot.slane %v1156, 6
    %v1216 = vmul.f32 %v1211, %v1214
    %1218 = vrot.lane.b32.xlu0 %v1212, 64
    %v1219 = vpop.permute.xlu0 %1218
    %v1221 = vmul.f32 %v1211, %v1219
    %1223 = vrot.lane.b32.xlu0 %v1221, 32
    %v1224 = vpop.permute.xlu0 %1223
    %v1226 = vadd.f32 %v1216, %v1224
    %v1227 = vtanh.pop %v1226
    %1229 = vrot.lane.b32.xlu0 %v1227, 64
    %v1230 = vpop.permute.xlu0 %1229
    %v1232 = vmul.f32 %v1211, %v1230
    %v1234 = vrot.slane %v1232, 4
    %1235 = vrot.lane.b32.xlu0 %v1234, 32
    %v1236 = vpop.permute.xlu0 %1235
    %v1237 = vsel %vm159, %v1236, 0
    %1239 = vmatpush.msra.mxu0 0.0
    %1240 = vmatpush.msra.mxu0 0.0
    %1241 = vmatpush.msra.mxu0 0.0
    %1242 = vmatpush.msra.mxu0 0.0
    %1243 = vmatpush.msra.mxu0 0.0
    %1244 = vmatpush.msra.mxu0 0.0
    %1245 = vmatpush.msra.mxu0 0.0
    %1246 = vmatpush.msra.mxu0 0.0
    %1247 = vmatpush.msra.mxu0 0.0
    %1248 = vmatpush.msra.mxu0 0.0
    %1249 = vmatpush.msra.mxu0 0.0
    %1250 = vmatpush.msra.mxu0 0.0
    %1251 = vmatpush.msra.mxu0 %v722
    %1252 = vmatpush.msra.mxu0 %v721
    %1253 = vmatpush.msra.mxu0 %v720
    %1254 = vmatpush.msra.mxu0 %v719
    %1255 = vmatmul.f32.gmra.mxu0 %v1237
    %v1256 = vpop.f32.mrf.mxu0
    %v1257 = vadd.f32 0.0, %v1256
    %1258 = vdwg.mxu0
    %v1260 = vrot.slane %v1257, 2
    %v1262 = vadd.f32 %v758, %v1260
    %v1263 = vxor.u32 %v1262, 2147483648
    %v1264 = vmul.f32 %v1263, 1.442695
    %v1265 = vpow.pop %v1264
    %v1266 = vadd.f32 %v1265, 1.0
    %v1267 = vrcp.pop %v1266
    %v1268 = vmul.f32 %v1266, %v1267
    %v1269 = vsub.f32 1.0, %v1268
    %v1270 = vmul.f32 %v1267, %v1269
    %v1271 = vadd.f32 %v1267, %v1270
    %vm1272 = vweird.f32 %v1266
    %vm1273 = vweird.f32 %v1267
    %vm1274 = vmor %vm1272, %vm1273
    %v1275 = vsel %vm1274, %v1267, %v1271
    %v1276 = vand.u32 2147483647, %v1266
    %vm1277 = vcmp.eq.f32.partialorder %v1276, 8.507059e+37
    %v1278 = vand.u32 %v1266, 2147483648
    %v1279 = vor.u32 1.1754944e-38, %v1278
    %v1280 = vsel %vm1277, %v1279, %v1275
    %v1281 = vmul.f32 1.0, %v1280
    %v1282 = vtanh.pop %v1262
    %v1284 = vrot.slane %v1226, 6
    %v1286 = vmul.f32 %v1281, %v1284
    %1288 = vrot.lane.b32.xlu0 %v1282, 64
    %v1289 = vpop.permute.xlu0 %1288
    %v1291 = vmul.f32 %v1281, %v1289
    %1293 = vrot.lane.b32.xlu0 %v1291, 32
    %v1294 = vpop.permute.xlu0 %1293
    %v1296 = vadd.f32 %v1286, %v1294
    %v1297 = vtanh.pop %v1296
    %1299 = vrot.lane.b32.xlu0 %v1297, 64
    %v1300 = vpop.permute.xlu0 %1299
    %v1302 = vmul.f32 %v1281, %v1300
    %v1303 = vtanh.pop %v1302
    %v1304 = vld [vmem:[#allocation10] sm:$0xff]
    %v1305 = vld [vmem:[#allocation10 + $0x8] sm:$0xff]
    %v1306 = vld [vmem:[#allocation10 + $0x10] sm:$0xff]
    %v1307 = vld [vmem:[#allocation10 + $0x18] sm:$0xff]
    %v1308 = vld [vmem:[%s8] sm:$0x1]
    %v1310 = vperm.slane %v1308, 0
    %v1313 = vrot.slane %v1303, 6
    %1314 = vrot.lane.b32.xlu0 %v1313, 32
    %v1315 = vpop.permute.xlu0 %1314
    %v1316 = vsel %vm159, %v1315, 0
    %1318 = vmatpush.msra.mxu0 0.0
    %1319 = vmatpush.msra.mxu0 0.0
    %1320 = vmatpush.msra.mxu0 0.0
    %1321 = vmatpush.msra.mxu0 0.0
    %1322 = vmatpush.msra.mxu0 0.0
    %1323 = vmatpush.msra.mxu0 0.0
    %1324 = vmatpush.msra.mxu0 0.0
    %1325 = vmatpush.msra.mxu0 0.0
    %1326 = vmatpush.msra.mxu0 0.0
    %1327 = vmatpush.msra.mxu0 0.0
    %1328 = vmatpush.msra.mxu0 0.0
    %1329 = vmatpush.msra.mxu0 0.0
    %1330 = vmatpush.msra.mxu0 %v1307
    %1331 = vmatpush.msra.mxu0 %v1306
    %1332 = vmatpush.msra.mxu0 %v1305
    %1333 = vmatpush.msra.mxu0 %v1304
    %1334 = vmatmul.f32.gmra.mxu0 %v1316
    %v1335 = vpop.f32.mrf.mxu0
    %v1336 = vadd.f32 %v1310, %v1335
    %1337 = vdwg.mxu0
    %v1338 = vtanh.pop %v1336
    %v1339 = vld [vmem:[%s9] sm:$0xff]
    %v1340 = vld [vmem:[%s9 + $0x8] sm:$0xff]
    %v1341 = vld [vmem:[%s9 + $0x10] sm:$0xff]
    %v1342 = vld [vmem:[%s9 + $0x18] sm:$0xff]
    %v1343 = vld [vmem:[%s10] sm:$0x1]
    %v1345 = vperm.slane %v1343, 0
    %v1348 = vsel %vm159, %v1338, 0
    %1350 = vmatpush.msra.mxu0 0.0
    %1351 = vmatpush.msra.mxu0 0.0
    %1352 = vmatpush.msra.mxu0 0.0
    %1353 = vmatpush.msra.mxu0 0.0
    %1354 = vmatpush.msra.mxu0 0.0
    %1355 = vmatpush.msra.mxu0 0.0
    %1356 = vmatpush.msra.mxu0 0.0
    %1357 = vmatpush.msra.mxu0 0.0
    %1358 = vmatpush.msra.mxu0 0.0
    %1359 = vmatpush.msra.mxu0 0.0
    %1360 = vmatpush.msra.mxu0 0.0
    %1361 = vmatpush.msra.mxu0 0.0
    %1362 = vmatpush.msra.mxu0 %v1342
    %1363 = vmatpush.msra.mxu0 %v1341
    %1364 = vmatpush.msra.mxu0 %v1340
    %1365 = vmatpush.msra.mxu0 %v1339
    %1366 = vmatmul.f32.gmra.mxu0 %v1348
    %v1367 = vpop.f32.mrf.mxu0
    %v1368 = vadd.f32 %v1345, %v1367
    %1369 = vdwg.mxu0
    %vm1370 = vcmask 58368
    %1371 = vst.msk [vmem:[#allocation11] sm:$0x3] %vm1370, %v1368
    // Predicated region
    $region66: #{tpu_custom_call.1} parent=1 // pred_check
      _
    $region67: #{tpu_custom_call.1} parent=1 // pred_check_branch
      %1373 = sbr.rel (0) target = $region69
    $region68: #{tpu_custom_call.1} parent=1 // pred_region
      %1375 = vsyncadd [#allocation4], 0
      %s1377 = sshll.u32 [#allocation11], 4
      %s1378 = int_to_ptr.vmem [resolvable:$true] %s1377
      %s1379 = sshll.u32 %s11, 4
      %s1380 = int_to_ptr.hbm [resolvable:$true] %s1379
      %1382 = dma.vmem_to_hbm [thread:$0]  %s1378, 32, %s1380, [#allocation4]
    $region69: #{tpu_custom_call.1} parent=1 // pred_fallthru
      _
    // Predicated region
    $region70: #{tpu_custom_call.1} parent=1 // pred_check
      _
    $region71: #{tpu_custom_call.1} parent=1 // pred_check_branch
      %1384 = sbr.rel (0) target = $region73
    $region72: #{tpu_custom_call.1} parent=1 // pred_region
      %1386 = dma.done [#allocation4], 32
    $region73: #{tpu_custom_call.1} parent=1 // pred_fallthru
      _
    %1387 = vsyncpa [#allocation3], 1
    %1388 = vsyncpa [#allocation6], 1
    %1389 = vsyncpa [#allocation9], 1
    %1390 = vsyncpa [#allocation4], 1

</llo_original>
